<compile_context>
chip_gen: v5e
topology: v5e:2x2
jax: 0.10.0
libtpu: 0.0.40
codegen_flags: <defaults>
</compile_context>

<pallas_src>
from functools import partial

import jax
import jax.numpy as jnp
from jax.experimental import pallas as pl
from jax.experimental.pallas import tpu as pltpu


def _resblock_kernel(x_ref, w1_ref, w2_ref, b1_ref, b2_ref, out_ref, *, alpha):
    # x_ref / out_ref : (Bb, C, L)   -- native PyTorch layout, L on lanes
    # w1_ref / w2_ref : (3, C_out, C_in)  (BN scale already folded in)
    # b1_ref / b2_ref : (C, 1)            (BN shift)
    Bb = x_ref.shape[0]
    L = x_ref.shape[2]

    w1 = w1_ref[...]
    w2 = w2_ref[...]
    b1 = b1_ref[...]
    b2 = b2_ref[...]

    def conv3(v, w):
        # v: (C_in, L); w: (3, C_out, C_in). Zero-padded kernel-size-3 conv along L.
        zcol = jnp.zeros((v.shape[0], 1), v.dtype)
        v_prev = jnp.concatenate([zcol, v[:, : L - 1]], axis=1)   # v[:, l-1]
        v_next = jnp.concatenate([v[:, 1:], zcol], axis=1)        # v[:, l+1]
        y = jnp.dot(w[0], v_prev, preferred_element_type=jnp.float32)
        y = y + jnp.dot(w[1], v, preferred_element_type=jnp.float32)
        y = y + jnp.dot(w[2], v_next, preferred_element_type=jnp.float32)
        return y

    def leaky(v):
        return jnp.where(v >= 0, v, alpha * v)

    # Static unroll over the batch block (Bb is a small compile-time constant).
    for i in range(Bb):
        x = x_ref[i]                                  # (C, L)
        h = leaky(conv3(x, w1) + b1)                  # conv1 + folded BN1 + LeakyReLU
        y = conv3(h.astype(x.dtype), w2) + b2 + x     # conv2 + folded BN2 + residual
        out_ref[i] = leaky(y).astype(out_ref.dtype)   # single lane-dense tile store


def resblock_basic_forward(x, w1, w2, bn1, bn2, *, eps=1e-5, alpha=0.1, batch_block=8):
    """x: (B, C, L); w1/w2: (C_out, C_in, 3) PyTorch conv1d weights;
    bn1/bn2: dicts with 'gamma','beta','mean','var' of shape (C,)."""
    B, C, L = x.shape

    def fold(w, bn):
        inv = jax.lax.rsqrt(bn["var"].astype(jnp.float32) + eps)
        scale = bn["gamma"] * inv                       # (C,)
        bias = bn["beta"] - bn["mean"] * scale          # (C,)
        wf = w * scale[:, None, None]                   # scale out-channels
        wk = jnp.transpose(wf, (2, 0, 1))               # (3, C_out, C_in)
        return wk.astype(x.dtype), bias.reshape(C, 1).astype(jnp.float32)

    w1k, b1 = fold(w1, bn1)
    w2k, b2 = fold(w2, bn2)

    # Batch blocking: amortize per-grid-step overhead, keep the batch axis parallel.
    bb = min(batch_block, B)
    if B % bb != 0:
        bb = 1
    grid = (B // bb,)

    out = pl.pallas_call(
        partial(_resblock_kernel, alpha=alpha),
        out_shape=jax.ShapeDtypeStruct((B, C, L), x.dtype),
        grid=grid,
        in_specs=[
            pl.BlockSpec((bb, C, L), lambda b: (b, 0, 0)),
            pl.BlockSpec((3, C, C), lambda b: (0, 0, 0)),
            pl.BlockSpec((3, C, C), lambda b: (0, 0, 0)),
            pl.BlockSpec((C, 1), lambda b: (0, 0)),
            pl.BlockSpec((C, 1), lambda b: (0, 0)),
        ],
        out_specs=pl.BlockSpec((bb, C, L), lambda b: (b, 0, 0)),
        compiler_params=pltpu.CompilerParams(dimension_semantics=("parallel",)),
    )(x, w1k, w2k, b1, b2)
    return out


def _reference_forward(x, w1, w2, bn1, bn2, eps=1e-5, alpha=0.1):
    """Pure-JAX reference of the PyTorch forward (inference-mode BN)."""
    B, C, L = x.shape

    def conv(v, w):
        vp = jnp.pad(v, ((0, 0), (0, 0), (1, 1)))
        return sum(
            jnp.einsum("oi,bil->bol", w[:, :, k], vp[:, :, k : k + L]) for k in range(3)
        )

    def bn(v, p):
        inv = jax.lax.rsqrt(p["var"] + eps)
        return (v - p["mean"][None, :, None]) * (p["gamma"] * inv)[None, :, None] \
            + p["beta"][None, :, None]

    def lrelu(v):
        return jnp.where(v >= 0, v, alpha * v)

    h = lrelu(bn(conv(x, w1), bn1))
    y = bn(conv(h, w2), bn2) + x
    return lrelu(y)


if __name__ == "__main__":
    key = jax.random.PRNGKey(0)
    kx, kw1, kw2, kg1, kb1, km1, kv1, kg2, kb2, km2, kv2 = jax.random.split(key, 11)

    # Small shapes consistent with the module: (B, C, L) with C = inplanes.
    B, C, L = 4, 64, 16

    x = jax.random.normal(kx, (B, C, L), dtype=jnp.float32)
    w1 = 0.1 * jax.random.normal(kw1, (C, C, 3), dtype=jnp.float32)
    w2 = 0.1 * jax.random.normal(kw2, (C, C, 3), dtype=jnp.float32)

    bn1 = dict(
        gamma=1.0 + 0.1 * jax.random.normal(kg1, (C,), dtype=jnp.float32),
        beta=0.05 * jax.random.normal(kb1, (C,), dtype=jnp.float32),
        mean=0.1 * jax.random.normal(km1, (C,), dtype=jnp.float32),
        var=jax.random.uniform(kv1, (C,), minval=0.5, maxval=1.5, dtype=jnp.float32),
    )
    bn2 = dict(
        gamma=1.0 + 0.1 * jax.random.normal(kg2, (C,), dtype=jnp.float32),
        beta=0.05 * jax.random.normal(kb2, (C,), dtype=jnp.float32),
        mean=0.1 * jax.random.normal(km2, (C,), dtype=jnp.float32),
        var=jax.random.uniform(kv2, (C,), minval=0.5, maxval=1.5, dtype=jnp.float32),
    )

    out = resblock_basic_forward(x, w1, w2, bn1, bn2, batch_block=2)
    out = jax.block_until_ready(out)

    ref = _reference_forward(x, w1, w2, bn1, bn2)

    assert out.shape == (B, C, L), out.shape
    assert jnp.allclose(out, ref, atol=1e-4, rtol=1e-4), float(jnp.max(jnp.abs(out - ref)))

    print("KERNEL_OK")
</pallas_src>

<mosaic_0001>
module attributes {stable_mosaic.version = 11 : i64} {
  func.func @_resblock_kernel(%arg0: i32, %arg1: memref<2x64x16xf32, #tpu.memory_space<vmem>>, %arg2: memref<3x64x64xf32, #tpu.memory_space<vmem>>, %arg3: memref<3x64x64xf32, #tpu.memory_space<vmem>>, %arg4: memref<64x1xf32, #tpu.memory_space<vmem>>, %arg5: memref<64x1xf32, #tpu.memory_space<vmem>>, %arg6: memref<2x64x16xf32, #tpu.memory_space<vmem>>) attributes {dimension_semantics = [#tpu.dimension_semantics<parallel>], iteration_bounds = array<i64: 2>, scalar_prefetch = 0 : i64, scratch_operands = 0 : i64, tpu.core_type = #tpu.core_type<tc>, window_params = [{transform_indices = @transform_0, window_bounds = array<i64: 2, 64, 16>}, {pipeline_mode = #tpu.pipeline_mode<synchronous>, transform_indices = @transform_1, window_bounds = array<i64: 3, 64, 64>}, {pipeline_mode = #tpu.pipeline_mode<synchronous>, transform_indices = @transform_2, window_bounds = array<i64: 3, 64, 64>}, {pipeline_mode = #tpu.pipeline_mode<synchronous>, transform_indices = @transform_3, window_bounds = array<i64: 64, 1>}, {pipeline_mode = #tpu.pipeline_mode<synchronous>, transform_indices = @transform_4, window_bounds = array<i64: 64, 1>}, {transform_indices = @transform_5, window_bounds = array<i64: 2, 64, 16>}]} {
    %c0 = arith.constant 0 : index
    %c0_0 = arith.constant 0 : index
    %c0_1 = arith.constant 0 : index
    %0 = vector.load %arg2[%c0, %c0_0, %c0_1] : memref<3x64x64xf32, #tpu.memory_space<vmem>>, vector<3x64x64xf32>
    %c0_2 = arith.constant 0 : index
    %c0_3 = arith.constant 0 : index
    %c0_4 = arith.constant 0 : index
    %1 = vector.load %arg3[%c0_2, %c0_3, %c0_4] : memref<3x64x64xf32, #tpu.memory_space<vmem>>, vector<3x64x64xf32>
    %c0_5 = arith.constant 0 : index
    %c0_6 = arith.constant 0 : index
    %2 = vector.load %arg4[%c0_5, %c0_6] : memref<64x1xf32, #tpu.memory_space<vmem>>, vector<64x1xf32>
    %c0_7 = arith.constant 0 : index
    %c0_8 = arith.constant 0 : index
    %3 = vector.load %arg5[%c0_7, %c0_8] : memref<64x1xf32, #tpu.memory_space<vmem>>, vector<64x1xf32>
    %c0_9 = arith.constant 0 : index
    %c0_10 = arith.constant 0 : index
    %c0_11 = arith.constant 0 : index
    %4 = vector.load %arg1[%c0_9, %c0_10, %c0_11] : memref<2x64x16xf32, #tpu.memory_space<vmem>>, vector<1x64x16xf32>
    %5 = vector.shape_cast %4 : vector<1x64x16xf32> to vector<64x16xf32>
    %cst = arith.constant 0.000000e+00 : f32
    %6 = vector.broadcast %cst : f32 to vector<64x1xf32>
    %7 = vector.extract_strided_slice %5 {offsets = [0, 0], sizes = [64, 15], strides = [1, 1]} : vector<64x16xf32> to vector<64x15xf32>
    %8 = tpu.concatenate %6, %7 in 1 : vector<64x1xf32>, vector<64x15xf32> -> vector<64x16xf32>
    %9 = vector.extract_strided_slice %5 {offsets = [0, 1], sizes = [64, 15], strides = [1, 1]} : vector<64x16xf32> to vector<64x15xf32>
    %10 = tpu.concatenate %9, %6 in 1 : vector<64x15xf32>, vector<64x1xf32> -> vector<64x16xf32>
    %11 = vector.extract_strided_slice %0 {offsets = [0, 0, 0], sizes = [1, 64, 64], strides = [1, 1, 1]} : vector<3x64x64xf32> to vector<1x64x64xf32>
    %12 = vector.shape_cast %11 : vector<1x64x64xf32> to vector<64x64xf32>
    %cst_12 = arith.constant dense<0.000000e+00> : vector<64x16xf32>
    %13 = tpu.matmul %12, %8, %cst_12 {dimension_numbers = #tpu.dot_dimension_numbers<[1], [0], [0], [1], [0, 0, 1, 1], [], []>} : vector<64x64xf32>, vector<64x16xf32>, vector<64x16xf32> -> vector<64x16xf32>
    %14 = vector.extract_strided_slice %0 {offsets = [1, 0, 0], sizes = [1, 64, 64], strides = [1, 1, 1]} : vector<3x64x64xf32> to vector<1x64x64xf32>
    %15 = vector.shape_cast %14 : vector<1x64x64xf32> to vector<64x64xf32>
    %cst_13 = arith.constant dense<0.000000e+00> : vector<64x16xf32>
    %16 = tpu.matmul %15, %5, %cst_13 {dimension_numbers = #tpu.dot_dimension_numbers<[1], [0], [0], [1], [0, 0, 1, 1], [], []>} : vector<64x64xf32>, vector<64x16xf32>, vector<64x16xf32> -> vector<64x16xf32>
    %17 = arith.addf %13, %16 : vector<64x16xf32>
    %18 = vector.extract_strided_slice %0 {offsets = [2, 0, 0], sizes = [1, 64, 64], strides = [1, 1, 1]} : vector<3x64x64xf32> to vector<1x64x64xf32>
    %19 = vector.shape_cast %18 : vector<1x64x64xf32> to vector<64x64xf32>
    %cst_14 = arith.constant dense<0.000000e+00> : vector<64x16xf32>
    %20 = tpu.matmul %19, %10, %cst_14 {dimension_numbers = #tpu.dot_dimension_numbers<[1], [0], [0], [1], [0, 0, 1, 1], [], []>} : vector<64x64xf32>, vector<64x16xf32>, vector<64x16xf32> -> vector<64x16xf32>
    %21 = arith.addf %17, %20 : vector<64x16xf32>
    %22 = vector.broadcast %2 : vector<64x1xf32> to vector<64x16xf32>
    %23 = arith.addf %21, %22 : vector<64x16xf32>
    %cst_15 = arith.constant 0.000000e+00 : f32
    %24 = vector.broadcast %cst_15 : f32 to vector<64x16xf32>
    %25 = arith.cmpf oge, %23, %24 : vector<64x16xf32>
    %cst_16 = arith.constant 1.000000e-01 : f32
    %26 = vector.broadcast %cst_16 : f32 to vector<64x16xf32>
    %27 = arith.mulf %26, %23 : vector<64x16xf32>
    %28 = arith.select %25, %23, %27 : vector<64x16xi1>, vector<64x16xf32>
    %cst_17 = arith.constant 0.000000e+00 : f32
    %29 = vector.broadcast %cst_17 : f32 to vector<64x1xf32>
    %30 = vector.extract_strided_slice %28 {offsets = [0, 0], sizes = [64, 15], strides = [1, 1]} : vector<64x16xf32> to vector<64x15xf32>
    %31 = tpu.concatenate %29, %30 in 1 : vector<64x1xf32>, vector<64x15xf32> -> vector<64x16xf32>
    %32 = vector.extract_strided_slice %28 {offsets = [0, 1], sizes = [64, 15], strides = [1, 1]} : vector<64x16xf32> to vector<64x15xf32>
    %33 = tpu.concatenate %32, %29 in 1 : vector<64x15xf32>, vector<64x1xf32> -> vector<64x16xf32>
    %34 = vector.extract_strided_slice %1 {offsets = [0, 0, 0], sizes = [1, 64, 64], strides = [1, 1, 1]} : vector<3x64x64xf32> to vector<1x64x64xf32>
    %35 = vector.shape_cast %34 : vector<1x64x64xf32> to vector<64x64xf32>
    %cst_18 = arith.constant dense<0.000000e+00> : vector<64x16xf32>
    %36 = tpu.matmul %35, %31, %cst_18 {dimension_numbers = #tpu.dot_dimension_numbers<[1], [0], [0], [1], [0, 0, 1, 1], [], []>} : vector<64x64xf32>, vector<64x16xf32>, vector<64x16xf32> -> vector<64x16xf32>
    %37 = vector.extract_strided_slice %1 {offsets = [1, 0, 0], sizes = [1, 64, 64], strides = [1, 1, 1]} : vector<3x64x64xf32> to vector<1x64x64xf32>
    %38 = vector.shape_cast %37 : vector<1x64x64xf32> to vector<64x64xf32>
    %cst_19 = arith.constant dense<0.000000e+00> : vector<64x16xf32>
    %39 = tpu.matmul %38, %28, %cst_19 {dimension_numbers = #tpu.dot_dimension_numbers<[1], [0], [0], [1], [0, 0, 1, 1], [], []>} : vector<64x64xf32>, vector<64x16xf32>, vector<64x16xf32> -> vector<64x16xf32>
    %40 = arith.addf %36, %39 : vector<64x16xf32>
    %41 = vector.extract_strided_slice %1 {offsets = [2, 0, 0], sizes = [1, 64, 64], strides = [1, 1, 1]} : vector<3x64x64xf32> to vector<1x64x64xf32>
    %42 = vector.shape_cast %41 : vector<1x64x64xf32> to vector<64x64xf32>
    %cst_20 = arith.constant dense<0.000000e+00> : vector<64x16xf32>
    %43 = tpu.matmul %42, %33, %cst_20 {dimension_numbers = #tpu.dot_dimension_numbers<[1], [0], [0], [1], [0, 0, 1, 1], [], []>} : vector<64x64xf32>, vector<64x16xf32>, vector<64x16xf32> -> vector<64x16xf32>
    %44 = arith.addf %40, %43 : vector<64x16xf32>
    %45 = vector.broadcast %3 : vector<64x1xf32> to vector<64x16xf32>
    %46 = arith.addf %44, %45 : vector<64x16xf32>
    %47 = arith.addf %46, %5 : vector<64x16xf32>
    %cst_21 = arith.constant 0.000000e+00 : f32
    %48 = vector.broadcast %cst_21 : f32 to vector<64x16xf32>
    %49 = arith.cmpf oge, %47, %48 : vector<64x16xf32>
    %cst_22 = arith.constant 1.000000e-01 : f32
    %50 = vector.broadcast %cst_22 : f32 to vector<64x16xf32>
    %51 = arith.mulf %50, %47 : vector<64x16xf32>
    %52 = arith.select %49, %47, %51 : vector<64x16xi1>, vector<64x16xf32>
    %c0_23 = arith.constant 0 : index
    %c0_24 = arith.constant 0 : index
    %c0_25 = arith.constant 0 : index
    %53 = vector.load %arg6[%c0_23, %c0_24, %c0_25] : memref<2x64x16xf32, #tpu.memory_space<vmem>>, vector<1x64x16xf32>
    %54 = vector.shape_cast %53 : vector<1x64x16xf32> to vector<64x16xf32>
    %55 = vector.shape_cast %52 : vector<64x16xf32> to vector<1x64x16xf32>
    tpu.vector_store %arg6[%c0_23, %c0_24, %c0_25], %55 {strides = array<i32>} : memref<2x64x16xf32, #tpu.memory_space<vmem>>, vector<1x64x16xf32>,
    %c1 = arith.constant 1 : index
    %c0_26 = arith.constant 0 : index
    %c0_27 = arith.constant 0 : index
    %56 = vector.load %arg1[%c1, %c0_26, %c0_27] : memref<2x64x16xf32, #tpu.memory_space<vmem>>, vector<1x64x16xf32>
    %57 = vector.shape_cast %56 : vector<1x64x16xf32> to vector<64x16xf32>
    %cst_28 = arith.constant 0.000000e+00 : f32
    %58 = vector.broadcast %cst_28 : f32 to vector<64x1xf32>
    %59 = vector.extract_strided_slice %57 {offsets = [0, 0], sizes = [64, 15], strides = [1, 1]} : vector<64x16xf32> to vector<64x15xf32>
    %60 = tpu.concatenate %58, %59 in 1 : vector<64x1xf32>, vector<64x15xf32> -> vector<64x16xf32>
    %61 = vector.extract_strided_slice %57 {offsets = [0, 1], sizes = [64, 15], strides = [1, 1]} : vector<64x16xf32> to vector<64x15xf32>
    %62 = tpu.concatenate %61, %58 in 1 : vector<64x15xf32>, vector<64x1xf32> -> vector<64x16xf32>
    %63 = vector.extract_strided_slice %0 {offsets = [0, 0, 0], sizes = [1, 64, 64], strides = [1, 1, 1]} : vector<3x64x64xf32> to vector<1x64x64xf32>
    %64 = vector.shape_cast %63 : vector<1x64x64xf32> to vector<64x64xf32>
    %cst_29 = arith.constant dense<0.000000e+00> : vector<64x16xf32>
    %65 = tpu.matmul %64, %60, %cst_29 {dimension_numbers = #tpu.dot_dimension_numbers<[1], [0], [0], [1], [0, 0, 1, 1], [], []>} : vector<64x64xf32>, vector<64x16xf32>, vector<64x16xf32> -> vector<64x16xf32>
    %66 = vector.extract_strided_slice %0 {offsets = [1, 0, 0], sizes = [1, 64, 64], strides = [1, 1, 1]} : vector<3x64x64xf32> to vector<1x64x64xf32>
    %67 = vector.shape_cast %66 : vector<1x64x64xf32> to vector<64x64xf32>
    %cst_30 = arith.constant dense<0.000000e+00> : vector<64x16xf32>
    %68 = tpu.matmul %67, %57, %cst_30 {dimension_numbers = #tpu.dot_dimension_numbers<[1], [0], [0], [1], [0, 0, 1, 1], [], []>} : vector<64x64xf32>, vector<64x16xf32>, vector<64x16xf32> -> vector<64x16xf32>
    %69 = arith.addf %65, %68 : vector<64x16xf32>
    %70 = vector.extract_strided_slice %0 {offsets = [2, 0, 0], sizes = [1, 64, 64], strides = [1, 1, 1]} : vector<3x64x64xf32> to vector<1x64x64xf32>
    %71 = vector.shape_cast %70 : vector<1x64x64xf32> to vector<64x64xf32>
    %cst_31 = arith.constant dense<0.000000e+00> : vector<64x16xf32>
    %72 = tpu.matmul %71, %62, %cst_31 {dimension_numbers = #tpu.dot_dimension_numbers<[1], [0], [0], [1], [0, 0, 1, 1], [], []>} : vector<64x64xf32>, vector<64x16xf32>, vector<64x16xf32> -> vector<64x16xf32>
    %73 = arith.addf %69, %72 : vector<64x16xf32>
    %74 = vector.broadcast %2 : vector<64x1xf32> to vector<64x16xf32>
    %75 = arith.addf %73, %74 : vector<64x16xf32>
    %cst_32 = arith.constant 0.000000e+00 : f32
    %76 = vector.broadcast %cst_32 : f32 to vector<64x16xf32>
    %77 = arith.cmpf oge, %75, %76 : vector<64x16xf32>
    %cst_33 = arith.constant 1.000000e-01 : f32
    %78 = vector.broadcast %cst_33 : f32 to vector<64x16xf32>
    %79 = arith.mulf %78, %75 : vector<64x16xf32>
    %80 = arith.select %77, %75, %79 : vector<64x16xi1>, vector<64x16xf32>
    %cst_34 = arith.constant 0.000000e+00 : f32
    %81 = vector.broadcast %cst_34 : f32 to vector<64x1xf32>
    %82 = vector.extract_strided_slice %80 {offsets = [0, 0], sizes = [64, 15], strides = [1, 1]} : vector<64x16xf32> to vector<64x15xf32>
    %83 = tpu.concatenate %81, %82 in 1 : vector<64x1xf32>, vector<64x15xf32> -> vector<64x16xf32>
    %84 = vector.extract_strided_slice %80 {offsets = [0, 1], sizes = [64, 15], strides = [1, 1]} : vector<64x16xf32> to vector<64x15xf32>
    %85 = tpu.concatenate %84, %81 in 1 : vector<64x15xf32>, vector<64x1xf32> -> vector<64x16xf32>
    %86 = vector.extract_strided_slice %1 {offsets = [0, 0, 0], sizes = [1, 64, 64], strides = [1, 1, 1]} : vector<3x64x64xf32> to vector<1x64x64xf32>
    %87 = vector.shape_cast %86 : vector<1x64x64xf32> to vector<64x64xf32>
    %cst_35 = arith.constant dense<0.000000e+00> : vector<64x16xf32>
    %88 = tpu.matmul %87, %83, %cst_35 {dimension_numbers = #tpu.dot_dimension_numbers<[1], [0], [0], [1], [0, 0, 1, 1], [], []>} : vector<64x64xf32>, vector<64x16xf32>, vector<64x16xf32> -> vector<64x16xf32>
    %89 = vector.extract_strided_slice %1 {offsets = [1, 0, 0], sizes = [1, 64, 64], strides = [1, 1, 1]} : vector<3x64x64xf32> to vector<1x64x64xf32>
    %90 = vector.shape_cast %89 : vector<1x64x64xf32> to vector<64x64xf32>
    %cst_36 = arith.constant dense<0.000000e+00> : vector<64x16xf32>
    %91 = tpu.matmul %90, %80, %cst_36 {dimension_numbers = #tpu.dot_dimension_numbers<[1], [0], [0], [1], [0, 0, 1, 1], [], []>} : vector<64x64xf32>, vector<64x16xf32>, vector<64x16xf32> -> vector<64x16xf32>
    %92 = arith.addf %88, %91 : vector<64x16xf32>
    %93 = vector.extract_strided_slice %1 {offsets = [2, 0, 0], sizes = [1, 64, 64], strides = [1, 1, 1]} : vector<3x64x64xf32> to vector<1x64x64xf32>
    %94 = vector.shape_cast %93 : vector<1x64x64xf32> to vector<64x64xf32>
    %cst_37 = arith.constant dense<0.000000e+00> : vector<64x16xf32>
    %95 = tpu.matmul %94, %85, %cst_37 {dimension_numbers = #tpu.dot_dimension_numbers<[1], [0], [0], [1], [0, 0, 1, 1], [], []>} : vector<64x64xf32>, vector<64x16xf32>, vector<64x16xf32> -> vector<64x16xf32>
    %96 = arith.addf %92, %95 : vector<64x16xf32>
    %97 = vector.broadcast %3 : vector<64x1xf32> to vector<64x16xf32>
    %98 = arith.addf %96, %97 : vector<64x16xf32>
    %99 = arith.addf %98, %57 : vector<64x16xf32>
    %cst_38 = arith.constant 0.000000e+00 : f32
    %100 = vector.broadcast %cst_38 : f32 to vector<64x16xf32>
    %101 = arith.cmpf oge, %99, %100 : vector<64x16xf32>
    %cst_39 = arith.constant 1.000000e-01 : f32
    %102 = vector.broadcast %cst_39 : f32 to vector<64x16xf32>
    %103 = arith.mulf %102, %99 : vector<64x16xf32>
    %104 = arith.select %101, %99, %103 : vector<64x16xi1>, vector<64x16xf32>
    %c1_40 = arith.constant 1 : index
    %c0_41 = arith.constant 0 : index
    %c0_42 = arith.constant 0 : index
    %105 = vector.load %arg6[%c1_40, %c0_41, %c0_42] : memref<2x64x16xf32, #tpu.memory_space<vmem>>, vector<1x64x16xf32>
    %106 = vector.shape_cast %105 : vector<1x64x16xf32> to vector<64x16xf32>
    %107 = vector.shape_cast %104 : vector<64x16xf32> to vector<1x64x16xf32>
    tpu.vector_store %arg6[%c1_40, %c0_41, %c0_42], %107 {strides = array<i32>} : memref<2x64x16xf32, #tpu.memory_space<vmem>>, vector<1x64x16xf32>,
    return
  }
  func.func @transform_0(%arg0: i32) -> (i32, i32, i32) {
    %c0_i32 = arith.constant 0 : i32
    %c0_i32_0 = arith.constant 0 : i32
    %c0_i32_1 = arith.constant 0 : i32
    return %arg0, %c0_i32, %c0_i32_0 : i32, i32, i32
  }
  func.func @transform_1(%arg0: i32) -> (i32, i32, i32) {
    %c0_i32 = arith.constant 0 : i32
    %c0_i32_0 = arith.constant 0 : i32
    %c0_i32_1 = arith.constant 0 : i32
    %c0_i32_2 = arith.constant 0 : i32
    return %c0_i32, %c0_i32_0, %c0_i32_1 : i32, i32, i32
  }
  func.func @transform_2(%arg0: i32) -> (i32, i32, i32) {
    %c0_i32 = arith.constant 0 : i32
    %c0_i32_0 = arith.constant 0 : i32
    %c0_i32_1 = arith.constant 0 : i32
    %c0_i32_2 = arith.constant 0 : i32
    return %c0_i32, %c0_i32_0, %c0_i32_1 : i32, i32, i32
  }
  func.func @transform_3(%arg0: i32) -> (i32, i32) {
    %c0_i32 = arith.constant 0 : i32
    %c0_i32_0 = arith.constant 0 : i32
    %c0_i32_1 = arith.constant 0 : i32
    return %c0_i32, %c0_i32_0 : i32, i32
  }
  func.func @transform_4(%arg0: i32) -> (i32, i32) {
    %c0_i32 = arith.constant 0 : i32
    %c0_i32_0 = arith.constant 0 : i32
    %c0_i32_1 = arith.constant 0 : i32
    return %c0_i32, %c0_i32_0 : i32, i32
  }
  func.func @transform_5(%arg0: i32) -> (i32, i32, i32) {
    %c0_i32 = arith.constant 0 : i32
    %c0_i32_0 = arith.constant 0 : i32
    %c0_i32_1 = arith.constant 0 : i32
    return %arg0, %c0_i32, %c0_i32_0 : i32, i32, i32
  }
}

</mosaic_0001>

<llo_original>
// kernel: tpu_custom_call.1
$region0: #{tpu_custom_call.1}
  #allocation0 [shape = 'u32[]', space=smem, size = 0x4, offset = 0x4, fixed_abs, tag = 'smem constant byte address 0x4 - core index']
  #allocation1 [shape = 'u32[72,128]{1,0:T(1,128)}', space=vmem, size = 0x9000, scoped, tag = 'internal scratch']
  %s0 = inlined_call_operand.vmem [shape: f32[4,64,16], index: 0, kind: input, shape index: {}]
  %s1 = inlined_call_operand.vmem [shape: f32[3,64,64], index: 1, kind: input, shape index: {}]
  %s2 = inlined_call_operand.vmem [shape: f32[3,64,64], index: 2, kind: input, shape index: {}]
  %s3 = inlined_call_operand.vmem [shape: f32[64,1], index: 3, kind: input, shape index: {}]
  %s4 = inlined_call_operand.vmem [shape: f32[64,1], index: 4, kind: input, shape index: {}]
  %s5 = inlined_call_operand.vmem [shape: f32[4,64,16], index: 5, kind: output, shape index: {}]
  %s6 = sld [smem:[#allocation0]]
  $region53: #{tpu_custom_call.1} parent=0
    _
  %s8 = ssub.s32 1, %s6
  %s9 = scalar_select 0, %s8, %s6
  loop: start=0, step=1, limit=4
  $region2: #{tpu_custom_call.1} parent=0 // loop_pre_header
    _
  $region3: #{tpu_custom_call.1} parent=0 // loop_header
    %s11 = sphi 0, %s15
    %p12 = scmp.ge.s32.totalorder %s11, 4
    %s21 = sphi 0, %s23
    %s24 = sphi 0, %s21
    %s25 = sphi 0, %s24
    %s41 = sphi 0, %s25
    %s45 = sphi 0, %s45
    %s47 = sphi 0, %s45
    %s48 = sphi 0, %s47
    %s62 = sphi 0, %s48
    %s66 = sphi 0, %s66
    %s68 = sphi 0, %s66
    %s69 = sphi 0, %s68
    %s83 = sphi 0, %s69
    %s87 = sphi 0, %s87
    %s89 = sphi 0, %s87
    %s90 = sphi 0, %s89
    %s104 = sphi 0, %s90
    %s108 = sphi 0, %s108
    %s110 = sphi 0, %s108
    %s111 = sphi 0, %s110
    %s125 = sphi 0, %s111
    %s131 = sphi 0, %s133
    %s134 = sphi 0, %s131
    %s135 = sphi 0, %s134
    %s151 = sphi 0, %s135
  $region4: #{tpu_custom_call.1} parent=0 // loop_header_branch
    %14 = sbr.rel (%p12) target = $region8
  $region5: #{tpu_custom_call.1} parent=0 // loop_body
    %s16 = ssub.s32 %s11, 1
    %s17 = ssub.s32 %s11, 2
    %s18 = sadd.s32 %s11, 1
    %s19 = ssub.s32 %s11, %s18
    %p20 = scmp.eq.s32.totalorder %s19, 0
    %s22 = sadd.s32 %s21, 1
    %s23 = scalar_select %p20, %s21, %s22
    %p26 = pneg %p20
    %p27 = scmp.eq.s32.totalorder %s11, 1
    %p28 = por %p26, %p27
    %p29 = scmp.ne.s32.totalorder %s21, %s24
    %p30 = scmp.eq.s32.totalorder %s11, 0
    %p31 = por %p29, %p30
    %p32 = scmp.ne.s32.totalorder %s21, %s24
    %p33 = scmp.eq.s32.totalorder %s16, 1
    %p34 = por %p32, %p33
    %p35 = scmp.ne.s32.totalorder %s24, %s25
    %p36 = scmp.eq.s32.totalorder %s16, 0
    %p37 = por %p35, %p36
    %p38 = scmp.ne.s32.totalorder %s24, %s25
    %p39 = scmp.eq.s32.totalorder %s17, 1
    %p40 = por %p38, %p39
    %p42 = scmp.ne.s32.totalorder %s25, %s41
    %p43 = scmp.eq.s32.totalorder %s17, 0
    %p44 = por %p42, %p43
    %s46 = sadd.s32 %s45, 1
    %p49 = scmp.eq.s32.totalorder %s11, 1
    %p50 = scmp.ne.s32.totalorder %s45, %s47
    %p51 = scmp.eq.s32.totalorder %s11, 0
    %p52 = por %p50, %p51
    %p53 = scmp.ne.s32.totalorder %s45, %s47
    %p54 = scmp.eq.s32.totalorder %s16, 1
    %p55 = por %p53, %p54
    %p56 = scmp.ne.s32.totalorder %s47, %s48
    %p57 = scmp.eq.s32.totalorder %s16, 0
    %p58 = por %p56, %p57
    %p59 = scmp.ne.s32.totalorder %s47, %s48
    %p60 = scmp.eq.s32.totalorder %s17, 1
    %p61 = por %p59, %p60
    %p63 = scmp.ne.s32.totalorder %s48, %s62
    %p64 = scmp.eq.s32.totalorder %s17, 0
    %p65 = por %p63, %p64
    %s67 = sadd.s32 %s66, 1
    %p70 = scmp.eq.s32.totalorder %s11, 1
    %p71 = scmp.ne.s32.totalorder %s66, %s68
    %p72 = scmp.eq.s32.totalorder %s11, 0
    %p73 = por %p71, %p72
    %p74 = scmp.ne.s32.totalorder %s66, %s68
    %p75 = scmp.eq.s32.totalorder %s16, 1
    %p76 = por %p74, %p75
    %p77 = scmp.ne.s32.totalorder %s68, %s69
    %p78 = scmp.eq.s32.totalorder %s16, 0
    %p79 = por %p77, %p78
    %p80 = scmp.ne.s32.totalorder %s68, %s69
    %p81 = scmp.eq.s32.totalorder %s17, 1
    %p82 = por %p80, %p81
    %p84 = scmp.ne.s32.totalorder %s69, %s83
    %p85 = scmp.eq.s32.totalorder %s17, 0
    %p86 = por %p84, %p85
    %s88 = sadd.s32 %s87, 1
    %p91 = scmp.eq.s32.totalorder %s11, 1
    %p92 = scmp.ne.s32.totalorder %s87, %s89
    %p93 = scmp.eq.s32.totalorder %s11, 0
    %p94 = por %p92, %p93
    %p95 = scmp.ne.s32.totalorder %s87, %s89
    %p96 = scmp.eq.s32.totalorder %s16, 1
    %p97 = por %p95, %p96
    %p98 = scmp.ne.s32.totalorder %s89, %s90
    %p99 = scmp.eq.s32.totalorder %s16, 0
    %p100 = por %p98, %p99
    %p101 = scmp.ne.s32.totalorder %s89, %s90
    %p102 = scmp.eq.s32.totalorder %s17, 1
    %p103 = por %p101, %p102
    %p105 = scmp.ne.s32.totalorder %s90, %s104
    %p106 = scmp.eq.s32.totalorder %s17, 0
    %p107 = por %p105, %p106
    %s109 = sadd.s32 %s108, 1
    %p112 = scmp.eq.s32.totalorder %s11, 1
    %p113 = scmp.ne.s32.totalorder %s108, %s110
    %p114 = scmp.eq.s32.totalorder %s11, 0
    %p115 = por %p113, %p114
    %p116 = scmp.ne.s32.totalorder %s108, %s110
    %p117 = scmp.eq.s32.totalorder %s16, 1
    %p118 = por %p116, %p117
    %p119 = scmp.ne.s32.totalorder %s110, %s111
    %p120 = scmp.eq.s32.totalorder %s16, 0
    %p121 = por %p119, %p120
    %p122 = scmp.ne.s32.totalorder %s110, %s111
    %p123 = scmp.eq.s32.totalorder %s17, 1
    %p124 = por %p122, %p123
    %p126 = scmp.ne.s32.totalorder %s111, %s125
    %p127 = scmp.eq.s32.totalorder %s17, 0
    %p128 = por %p126, %p127
    %s129 = ssub.s32 %s11, %s18
    %p130 = scmp.eq.s32.totalorder %s129, 0
    %s132 = sadd.s32 %s131, 1
    %s133 = scalar_select %p130, %s131, %s132
    %p136 = pneg %p130
    %p137 = scmp.eq.s32.totalorder %s11, 1
    %p138 = por %p136, %p137
    %p139 = scmp.ne.s32.totalorder %s131, %s134
    %p140 = scmp.eq.s32.totalorder %s11, 0
    %p141 = por %p139, %p140
    %p142 = scmp.ne.s32.totalorder %s131, %s134
    %p143 = scmp.eq.s32.totalorder %s16, 1
    %p144 = por %p142, %p143
    %p145 = scmp.ne.s32.totalorder %s134, %s135
    %p146 = scmp.eq.s32.totalorder %s16, 0
    %p147 = por %p145, %p146
    %p148 = scmp.ne.s32.totalorder %s134, %s135
    %p149 = scmp.eq.s32.totalorder %s17, 1
    %p150 = por %p148, %p149
    %p152 = scmp.ne.s32.totalorder %s135, %s151
    %p153 = scmp.eq.s32.totalorder %s17, 0
    %p154 = por %p152, %p153
    %p155 = scmp.le.s32.totalorder 1, %s11
    %p156 = scmp.lt.s32.totalorder %s11, 3
    %p157 = pnand %p155, %p156
    %p158 = pneg %p157
    // Predicated region
    $region9: #{tpu_custom_call.1} parent=5 // pred_check
      _
    $region10: #{tpu_custom_call.1} parent=5 // pred_check_branch
      %160 = sbr.rel (%p157) target = $region12
    $region11: #{tpu_custom_call.1} parent=5 // pred_region
      %s161 = ssub.s32 %s11, 1
      // Predicated region
      $region13: #{tpu_custom_call.1} parent=11 // pred_check
        %p162 = pneg %p58
      $region14: #{tpu_custom_call.1} parent=11 // pred_check_branch
        %164 = sbr.rel (%p162) target = $region16
      $region15: #{tpu_custom_call.1} parent=11 // pred_region
        _
      $region16: #{tpu_custom_call.1} parent=11 // pred_fallthru
        _
      // Predicated region
      $region17: #{tpu_custom_call.1} parent=11 // pred_check
        %p165 = pneg %p79
      $region18: #{tpu_custom_call.1} parent=11 // pred_check_branch
        %167 = sbr.rel (%p165) target = $region20
      $region19: #{tpu_custom_call.1} parent=11 // pred_region
        _
      $region20: #{tpu_custom_call.1} parent=11 // pred_fallthru
        _
      // Predicated region
      $region21: #{tpu_custom_call.1} parent=11 // pred_check
        %p168 = pneg %p100
      $region22: #{tpu_custom_call.1} parent=11 // pred_check_branch
        %170 = sbr.rel (%p168) target = $region24
      $region23: #{tpu_custom_call.1} parent=11 // pred_region
        _
      $region24: #{tpu_custom_call.1} parent=11 // pred_fallthru
        _
      // Predicated region
      $region25: #{tpu_custom_call.1} parent=11 // pred_check
        %p171 = pneg %p121
      $region26: #{tpu_custom_call.1} parent=11 // pred_check_branch
        %173 = sbr.rel (%p171) target = $region28
      $region27: #{tpu_custom_call.1} parent=11 // pred_region
        _
      $region28: #{tpu_custom_call.1} parent=11 // pred_fallthru
        _
    $region12: #{tpu_custom_call.1} parent=5 // pred_fallthru
      _
    %p174 = scmp.lt.s32.totalorder %s11, 2
    // Predicated region
    $region29: #{tpu_custom_call.1} parent=5 // pred_check
      %p175 = pneg %p174
    $region30: #{tpu_custom_call.1} parent=5 // pred_check_branch
      %177 = sbr.rel (%p175) target = $region32
    $region31: #{tpu_custom_call.1} parent=5 // pred_region
      // Predicated region
      $region33: #{tpu_custom_call.1} parent=31 // pred_check
        %p178 = pneg %p31
      $region34: #{tpu_custom_call.1} parent=31 // pred_check_branch
        %180 = sbr.rel (%p178) target = $region36
      $region35: #{tpu_custom_call.1} parent=31 // pred_region
        %s181 = smul.u32 2, %s11
        %p182 = scmp.lt.s32.totalorder %s181, 3
        %s183 = scalar_select %p182, %s181, 3
        %s184 = smul.addr %s183, 8
        %s185 = smul.addr %s184, 8
        %s186 = scalar_lea.vmem %s0, %s185
        %s187 = smul.u32 2, %s11
      $region36: #{tpu_custom_call.1} parent=31 // pred_fallthru
        _
    $region32: #{tpu_custom_call.1} parent=5 // pred_fallthru
      _
    %p188 = scmp.le.s32.totalorder 1, %s11
    %p189 = scmp.lt.s32.totalorder %s11, 3
    %p190 = pnand %p188, %p189
    %p191 = pneg %p190
    // Predicated region
    $region37: #{tpu_custom_call.1} parent=5 // pred_check
      _
    $region38: #{tpu_custom_call.1} parent=5 // pred_check_branch
      %193 = sbr.rel (%p190) target = $region40
    $region39: #{tpu_custom_call.1} parent=5 // pred_region
      %s194 = ssub.s32 %s11, 1
      %s195 = smul.u32 2, %s16
      %p196 = scmp.lt.s32.totalorder %s195, 3
      %s197 = scalar_select %p196, %s195, 3
      %s198 = smul.addr %s197, 8
      %s199 = smul.addr %s198, 8
      %s200 = scalar_lea.vmem %s0, %s199
      %p201 = pneg %p37
      %p202 = pneg %p34
      %p203 = pneg %p58
      %p204 = pneg %p55
      %p205 = pneg %p79
      %p206 = pneg %p76
      %p207 = pneg %p100
      %p208 = pneg %p97
      %p209 = pneg %p121
      %p210 = pneg %p118
      %p211 = pneg %p147
      %p212 = pneg %p144
      %s213 = smul.u32 2, %s16
      %p214 = scmp.lt.s32.totalorder %s213, 3
      %s215 = scalar_select %p214, %s213, 3
      %s216 = smul.addr %s215, 8
      %s217 = smul.addr %s216, 8
      %s218 = scalar_lea.vmem %s5, %s217
      %s219 = smul.u32 2, %s16
      %p220 = scmp.lt.s32.totalorder %s219, 3
      %s221 = scalar_select %p220, %s219, 3
      %s222 = smul.addr %s221, 8
      %s223 = smul.addr %s222, 8
      %s224 = scalar_lea.vmem %s0, %s223
      %s225 = smul.u32 2, %s16
      %s226 = smul.u32 2, %s16
      %p227 = scmp.lt.s32.totalorder %s226, 3
      %s228 = scalar_select %p227, %s226, 3
      %s229 = smul.addr %s228, 8
      %s230 = smul.addr %s229, 8
      %s231 = scalar_lea.vmem %s5, %s230
      %s232 = smul.u32 2, %s16
      %v233 = vld [vmem:[%s1] sm:$0xff]
      %v234 = vld [vmem:[%s1 + $0x8] sm:$0xff]
      %v235 = vld [vmem:[%s1 + $0x10] sm:$0xff]
      %v236 = vld [vmem:[%s1 + $0x18] sm:$0xff]
      %v237 = vld [vmem:[%s1 + $0x20] sm:$0xff]
      %v238 = vld [vmem:[%s1 + $0x28] sm:$0xff]
      %v239 = vld [vmem:[%s1 + $0x30] sm:$0xff]
      %v240 = vld [vmem:[%s1 + $0x38] sm:$0xff]
      %v241 = vld [vmem:[%s1 + $0x40] sm:$0xff]
      %v242 = vld [vmem:[%s1 + $0x48] sm:$0xff]
      %v243 = vld [vmem:[%s1 + $0x50] sm:$0xff]
      %v244 = vld [vmem:[%s1 + $0x58] sm:$0xff]
      %v245 = vld [vmem:[%s1 + $0x60] sm:$0xff]
      %v246 = vld [vmem:[%s1 + $0x68] sm:$0xff]
      %v247 = vld [vmem:[%s1 + $0x70] sm:$0xff]
      %v248 = vld [vmem:[%s1 + $0x78] sm:$0xff]
      %v249 = vld [vmem:[%s1 + $0x80] sm:$0xff]
      %v250 = vld [vmem:[%s1 + $0x88] sm:$0xff]
      %v251 = vld [vmem:[%s1 + $0x90] sm:$0xff]
      %v252 = vld [vmem:[%s1 + $0x98] sm:$0xff]
      %v253 = vld [vmem:[%s1 + $0xa0] sm:$0xff]
      %v254 = vld [vmem:[%s1 + $0xa8] sm:$0xff]
      %v255 = vld [vmem:[%s1 + $0xb0] sm:$0xff]
      %v256 = vld [vmem:[%s1 + $0xb8] sm:$0xff]
      %v257 = vld [vmem:[%s2] sm:$0xff]
      %v258 = vld [vmem:[%s2 + $0x8] sm:$0xff]
      %v259 = vld [vmem:[%s2 + $0x10] sm:$0xff]
      %v260 = vld [vmem:[%s2 + $0x18] sm:$0xff]
      %v261 = vld [vmem:[%s2 + $0x20] sm:$0xff]
      %v262 = vld [vmem:[%s2 + $0x28] sm:$0xff]
      %v263 = vld [vmem:[%s2 + $0x30] sm:$0xff]
      %v264 = vld [vmem:[%s2 + $0x38] sm:$0xff]
      %v265 = vld [vmem:[%s2 + $0x40] sm:$0xff]
      %v266 = vld [vmem:[%s2 + $0x48] sm:$0xff]
      %v267 = vld [vmem:[%s2 + $0x50] sm:$0xff]
      %v268 = vld [vmem:[%s2 + $0x58] sm:$0xff]
      %v269 = vld [vmem:[%s2 + $0x60] sm:$0xff]
      %v270 = vld [vmem:[%s2 + $0x68] sm:$0xff]
      %v271 = vld [vmem:[%s2 + $0x70] sm:$0xff]
      %v272 = vld [vmem:[%s2 + $0x78] sm:$0xff]
      %v273 = vld [vmem:[%s2 + $0x80] sm:$0xff]
      %v274 = vld [vmem:[%s2 + $0x88] sm:$0xff]
      %v275 = vld [vmem:[%s2 + $0x90] sm:$0xff]
      %v276 = vld [vmem:[%s2 + $0x98] sm:$0xff]
      %v277 = vld [vmem:[%s2 + $0xa0] sm:$0xff]
      %v278 = vld [vmem:[%s2 + $0xa8] sm:$0xff]
      %v279 = vld [vmem:[%s2 + $0xb0] sm:$0xff]
      %v280 = vld [vmem:[%s2 + $0xb8] sm:$0xff]
      %v281 = vld [vmem:[%s3] sm:$0xff]
      %v282 = vld [vmem:[%s3 + $0x8] sm:$0xff]
      %v283 = vld [vmem:[%s3 + $0x10] sm:$0xff]
      %v284 = vld [vmem:[%s3 + $0x18] sm:$0xff]
      %v285 = vld [vmem:[%s3 + $0x20] sm:$0xff]
      %v286 = vld [vmem:[%s3 + $0x28] sm:$0xff]
      %v287 = vld [vmem:[%s3 + $0x30] sm:$0xff]
      %v288 = vld [vmem:[%s3 + $0x38] sm:$0xff]
      %v289 = vld [vmem:[%s4] sm:$0xff]
      %v290 = vld [vmem:[%s4 + $0x8] sm:$0xff]
      %v291 = vld [vmem:[%s4 + $0x10] sm:$0xff]
      %v292 = vld [vmem:[%s4 + $0x18] sm:$0xff]
      %v293 = vld [vmem:[%s4 + $0x20] sm:$0xff]
      %v294 = vld [vmem:[%s4 + $0x28] sm:$0xff]
      %v295 = vld [vmem:[%s4 + $0x30] sm:$0xff]
      %v296 = vld [vmem:[%s4 + $0x38] sm:$0xff]
      %v297 = vld [vmem:[%s224] sm:$0xff]
      %v298 = vld [vmem:[%s224 + $0x8] sm:$0xff]
      %v299 = vld [vmem:[%s224 + $0x10] sm:$0xff]
      %v300 = vld [vmem:[%s224 + $0x18] sm:$0xff]
      %v301 = vld [vmem:[%s224 + $0x20] sm:$0xff]
      %v302 = vld [vmem:[%s224 + $0x28] sm:$0xff]
      %v303 = vld [vmem:[%s224 + $0x30] sm:$0xff]
      %v304 = vld [vmem:[%s224 + $0x38] sm:$0xff]
      %313 = vrot.lane.b32.xlu0 %v297, 1
      %v314 = vpop.permute.xlu0 %313
      %315 = vrot.lane.b32.xlu0 %v298, 1
      %v316 = vpop.permute.xlu0 %315
      %317 = vrot.lane.b32.xlu0 %v299, 1
      %v318 = vpop.permute.xlu0 %317
      %319 = vrot.lane.b32.xlu0 %v300, 1
      %v320 = vpop.permute.xlu0 %319
      %321 = vrot.lane.b32.xlu0 %v301, 1
      %v322 = vpop.permute.xlu0 %321
      %323 = vrot.lane.b32.xlu0 %v302, 1
      %v324 = vpop.permute.xlu0 %323
      %325 = vrot.lane.b32.xlu0 %v303, 1
      %v326 = vpop.permute.xlu0 %325
      %327 = vrot.lane.b32.xlu0 %v304, 1
      %v328 = vpop.permute.xlu0 %327
      %vm337 = vcmask 7168
      %v338 = vsel %vm337, 0.0, %v314
      %v339 = vsel %vm337, 0.0, %v316
      %v340 = vsel %vm337, 0.0, %v318
      %v341 = vsel %vm337, 0.0, %v320
      %v342 = vsel %vm337, 0.0, %v322
      %v343 = vsel %vm337, 0.0, %v324
      %v344 = vsel %vm337, 0.0, %v326
      %v345 = vsel %vm337, 0.0, %v328
      %346 = vrot.lane.b32.xlu0 %v297, 127
      %v347 = vpop.permute.xlu0 %346
      %348 = vrot.lane.b32.xlu0 %v298, 127
      %v349 = vpop.permute.xlu0 %348
      %350 = vrot.lane.b32.xlu0 %v299, 127
      %v351 = vpop.permute.xlu0 %350
      %352 = vrot.lane.b32.xlu0 %v300, 127
      %v353 = vpop.permute.xlu0 %352
      %354 = vrot.lane.b32.xlu0 %v301, 127
      %v355 = vpop.permute.xlu0 %354
      %356 = vrot.lane.b32.xlu0 %v302, 127
      %v357 = vpop.permute.xlu0 %356
      %358 = vrot.lane.b32.xlu0 %v303, 127
      %v359 = vpop.permute.xlu0 %358
      %360 = vrot.lane.b32.xlu0 %v304, 127
      %v361 = vpop.permute.xlu0 %360
      %vm370 = vcmask 121856
      %v371 = vsel %vm370, %v347, 0.0
      %v372 = vsel %vm370, %v349, 0.0
      %v373 = vsel %vm370, %v351, 0.0
      %v374 = vsel %vm370, %v353, 0.0
      %v375 = vsel %vm370, %v355, 0.0
      %v376 = vsel %vm370, %v357, 0.0
      %v377 = vsel %vm370, %v359, 0.0
      %v378 = vsel %vm370, %v361, 0.0
      %vm379 = vcmask 523264
      %v381 = vsel %vm379, %v241, 0
      %v384 = vsel %vm379, %v242, 0
      %v387 = vsel %vm379, %v243, 0
      %v390 = vsel %vm379, %v244, 0
      %v393 = vsel %vm379, %v245, 0
      %v396 = vsel %vm379, %v246, 0
      %v399 = vsel %vm379, %v247, 0
      %v402 = vsel %vm379, %v248, 0
      %404 = vmatpush.msra.mxu0 0.0
      %405 = vmatpush.msra.mxu0 0.0
      %406 = vmatpush.msra.mxu0 0.0
      %407 = vmatpush.msra.mxu0 0.0
      %408 = vmatpush.msra.mxu0 0.0
      %409 = vmatpush.msra.mxu0 0.0
      %410 = vmatpush.msra.mxu0 0.0
      %411 = vmatpush.msra.mxu0 0.0
      %412 = vmatpush.msra.mxu0 %v304
      %413 = vmatpush.msra.mxu0 %v303
      %414 = vmatpush.msra.mxu0 %v302
      %415 = vmatpush.msra.mxu0 %v301
      %416 = vmatpush.msra.mxu0 %v300
      %417 = vmatpush.msra.mxu0 %v299
      %418 = vmatpush.msra.mxu0 %v298
      %419 = vmatpush.msra.mxu0 %v297
      %420 = vmatmul.f32.gmra.mxu0 %v381
      %v421 = vpop.f32.mrf.mxu0
      %v422 = vadd.f32 0.0, %v421
      %423 = vmatmul.f32.gmra.mxu0 %v384
      %v424 = vpop.f32.mrf.mxu0
      %v425 = vadd.f32 0.0, %v424
      %426 = vmatmul.f32.gmra.mxu0 %v387
      %v427 = vpop.f32.mrf.mxu0
      %v428 = vadd.f32 0.0, %v427
      %429 = vmatmul.f32.gmra.mxu0 %v390
      %v430 = vpop.f32.mrf.mxu0
      %v431 = vadd.f32 0.0, %v430
      %432 = vmatmul.f32.gmra.mxu0 %v393
      %v433 = vpop.f32.mrf.mxu0
      %v434 = vadd.f32 0.0, %v433
      %435 = vmatmul.f32.gmra.mxu0 %v396
      %v436 = vpop.f32.mrf.mxu0
      %v437 = vadd.f32 0.0, %v436
      %438 = vmatmul.f32.gmra.mxu0 %v399
      %v439 = vpop.f32.mrf.mxu0
      %v440 = vadd.f32 0.0, %v439
      %441 = vmatmul.f32.gmra.mxu0 %v402
      %v442 = vpop.f32.mrf.mxu0
      %v443 = vadd.f32 0.0, %v442
      %444 = vdwg.mxu0
      %v446 = vsel %vm379, %v233, 0
      %v449 = vsel %vm379, %v234, 0
      %v452 = vsel %vm379, %v235, 0
      %v455 = vsel %vm379, %v236, 0
      %v458 = vsel %vm379, %v237, 0
      %v461 = vsel %vm379, %v238, 0
      %v464 = vsel %vm379, %v239, 0
      %v467 = vsel %vm379, %v240, 0
      %469 = vmatpush.msra.mxu0 0.0
      %470 = vmatpush.msra.mxu0 0.0
      %471 = vmatpush.msra.mxu0 0.0
      %472 = vmatpush.msra.mxu0 0.0
      %473 = vmatpush.msra.mxu0 0.0
      %474 = vmatpush.msra.mxu0 0.0
      %475 = vmatpush.msra.mxu0 0.0
      %476 = vmatpush.msra.mxu0 0.0
      %477 = vmatpush.msra.mxu0 %v345
      %478 = vmatpush.msra.mxu0 %v344
      %479 = vmatpush.msra.mxu0 %v343
      %480 = vmatpush.msra.mxu0 %v342
      %481 = vmatpush.msra.mxu0 %v341
      %482 = vmatpush.msra.mxu0 %v340
      %483 = vmatpush.msra.mxu0 %v339
      %484 = vmatpush.msra.mxu0 %v338
      %485 = vmatmul.f32.gmra.mxu0 %v446
      %v486 = vpop.f32.mrf.mxu0
      %v487 = vadd.f32 %v422, %v486
      %488 = vmatmul.f32.gmra.mxu0 %v449
      %v489 = vpop.f32.mrf.mxu0
      %v490 = vadd.f32 %v425, %v489
      %491 = vmatmul.f32.gmra.mxu0 %v452
      %v492 = vpop.f32.mrf.mxu0
      %v493 = vadd.f32 %v428, %v492
      %494 = vmatmul.f32.gmra.mxu0 %v455
      %v495 = vpop.f32.mrf.mxu0
      %v496 = vadd.f32 %v431, %v495
      %497 = vmatmul.f32.gmra.mxu0 %v458
      %v498 = vpop.f32.mrf.mxu0
      %v499 = vadd.f32 %v434, %v498
      %500 = vmatmul.f32.gmra.mxu0 %v461
      %v501 = vpop.f32.mrf.mxu0
      %v502 = vadd.f32 %v437, %v501
      %503 = vmatmul.f32.gmra.mxu0 %v464
      %v504 = vpop.f32.mrf.mxu0
      %v505 = vadd.f32 %v440, %v504
      %506 = vmatmul.f32.gmra.mxu0 %v467
      %v507 = vpop.f32.mrf.mxu0
      %v508 = vadd.f32 %v443, %v507
      %509 = vdwg.mxu0
      %v511 = vsel %vm379, %v249, 0
      %v514 = vsel %vm379, %v250, 0
      %v517 = vsel %vm379, %v251, 0
      %v520 = vsel %vm379, %v252, 0
      %v523 = vsel %vm379, %v253, 0
      %v526 = vsel %vm379, %v254, 0
      %v529 = vsel %vm379, %v255, 0
      %v532 = vsel %vm379, %v256, 0
      %534 = vmatpush.msra.mxu0 0.0
      %535 = vmatpush.msra.mxu0 0.0
      %536 = vmatpush.msra.mxu0 0.0
      %537 = vmatpush.msra.mxu0 0.0
      %538 = vmatpush.msra.mxu0 0.0
      %539 = vmatpush.msra.mxu0 0.0
      %540 = vmatpush.msra.mxu0 0.0
      %541 = vmatpush.msra.mxu0 0.0
      %542 = vmatpush.msra.mxu0 %v378
      %543 = vmatpush.msra.mxu0 %v377
      %544 = vmatpush.msra.mxu0 %v376
      %545 = vmatpush.msra.mxu0 %v375
      %546 = vmatpush.msra.mxu0 %v374
      %547 = vmatpush.msra.mxu0 %v373
      %548 = vmatpush.msra.mxu0 %v372
      %549 = vmatpush.msra.mxu0 %v371
      %550 = vmatmul.f32.gmra.mxu0 %v511
      %v551 = vpop.f32.mrf.mxu0
      %v552 = vadd.f32 0.0, %v551
      %553 = vmatmul.f32.gmra.mxu0 %v514
      %v554 = vpop.f32.mrf.mxu0
      %v555 = vadd.f32 0.0, %v554
      %556 = vmatmul.f32.gmra.mxu0 %v517
      %v557 = vpop.f32.mrf.mxu0
      %v558 = vadd.f32 0.0, %v557
      %559 = vmatmul.f32.gmra.mxu0 %v520
      %v560 = vpop.f32.mrf.mxu0
      %v561 = vadd.f32 0.0, %v560
      %562 = vmatmul.f32.gmra.mxu0 %v523
      %v563 = vpop.f32.mrf.mxu0
      %v564 = vadd.f32 0.0, %v563
      %565 = vmatmul.f32.gmra.mxu0 %v526
      %v566 = vpop.f32.mrf.mxu0
      %v567 = vadd.f32 0.0, %v566
      %568 = vmatmul.f32.gmra.mxu0 %v529
      %v569 = vpop.f32.mrf.mxu0
      %v570 = vadd.f32 0.0, %v569
      %571 = vmatmul.f32.gmra.mxu0 %v532
      %v572 = vpop.f32.mrf.mxu0
      %v573 = vadd.f32 0.0, %v572
      %574 = vdwg.mxu0
      %v575 = vadd.f32 %v487, %v552
      %v576 = vadd.f32 %v490, %v555
      %v577 = vadd.f32 %v493, %v558
      %v578 = vadd.f32 %v496, %v561
      %v579 = vadd.f32 %v499, %v564
      %v580 = vadd.f32 %v502, %v567
      %v581 = vadd.f32 %v505, %v570
      %v582 = vadd.f32 %v508, %v573
      %584 = vset.pattern.permute.xlu0 0
      %585 = vperm.xlu0 %584, %v281
      %v586 = vpop.permute.xlu0 %585
      %589 = vset.pattern.permute.xlu0 0
      %590 = vperm.xlu0 %589, %v282
      %v591 = vpop.permute.xlu0 %590
      %594 = vset.pattern.permute.xlu0 0
      %595 = vperm.xlu0 %594, %v283
      %v596 = vpop.permute.xlu0 %595
      %599 = vset.pattern.permute.xlu0 0
      %600 = vperm.xlu0 %599, %v284
      %v601 = vpop.permute.xlu0 %600
      %604 = vset.pattern.permute.xlu0 0
      %605 = vperm.xlu0 %604, %v285
      %v606 = vpop.permute.xlu0 %605
      %609 = vset.pattern.permute.xlu0 0
      %610 = vperm.xlu0 %609, %v286
      %v611 = vpop.permute.xlu0 %610
      %614 = vset.pattern.permute.xlu0 0
      %615 = vperm.xlu0 %614, %v287
      %v616 = vpop.permute.xlu0 %615
      %619 = vset.pattern.permute.xlu0 0
      %620 = vperm.xlu0 %619, %v288
      %v621 = vpop.permute.xlu0 %620
      %v623 = vadd.f32 %v575, %v586
      %v624 = vadd.f32 %v576, %v591
      %v625 = vadd.f32 %v577, %v596
      %v626 = vadd.f32 %v578, %v601
      %v627 = vadd.f32 %v579, %v606
      %v628 = vadd.f32 %v580, %v611
      %v629 = vadd.f32 %v581, %v616
      %v630 = vadd.f32 %v582, %v621
      %vm631 = vcmp.ge.f32.partialorder %v623, 0.0
      %vm632 = vcmp.ge.f32.partialorder %v624, 0.0
      %vm633 = vcmp.ge.f32.partialorder %v625, 0.0
      %vm634 = vcmp.ge.f32.partialorder %v626, 0.0
      %vm635 = vcmp.ge.f32.partialorder %v627, 0.0
      %vm636 = vcmp.ge.f32.partialorder %v628, 0.0
      %vm637 = vcmp.ge.f32.partialorder %v629, 0.0
      %vm638 = vcmp.ge.f32.partialorder %v630, 0.0
      %v639 = vmul.f32 %v623, 0.1
      %v640 = vmul.f32 %v624, 0.1
      %v641 = vmul.f32 %v625, 0.1
      %v642 = vmul.f32 %v626, 0.1
      %v643 = vmul.f32 %v627, 0.1
      %v644 = vmul.f32 %v628, 0.1
      %v645 = vmul.f32 %v629, 0.1
      %v646 = vmul.f32 %v630, 0.1
      %v647 = vsel %vm631, %v623, %v639
      %v648 = vsel %vm632, %v624, %v640
      %v649 = vsel %vm633, %v625, %v641
      %v650 = vsel %vm634, %v626, %v642
      %v651 = vsel %vm635, %v627, %v643
      %v652 = vsel %vm636, %v628, %v644
      %v653 = vsel %vm637, %v629, %v645
      %v654 = vsel %vm638, %v630, %v646
      %663 = vrot.lane.b32.xlu0 %v647, 1
      %v664 = vpop.permute.xlu0 %663
      %665 = vrot.lane.b32.xlu0 %v648, 1
      %v666 = vpop.permute.xlu0 %665
      %667 = vrot.lane.b32.xlu0 %v649, 1
      %v668 = vpop.permute.xlu0 %667
      %669 = vrot.lane.b32.xlu0 %v650, 1
      %v670 = vpop.permute.xlu0 %669
      %671 = vrot.lane.b32.xlu0 %v651, 1
      %v672 = vpop.permute.xlu0 %671
      %673 = vrot.lane.b32.xlu0 %v652, 1
      %v674 = vpop.permute.xlu0 %673
      %675 = vrot.lane.b32.xlu0 %v653, 1
      %v676 = vpop.permute.xlu0 %675
      %677 = vrot.lane.b32.xlu0 %v654, 1
      %v678 = vpop.permute.xlu0 %677
      %v687 = vsel %vm337, 0.0, %v664
      %v688 = vsel %vm337, 0.0, %v666
      %v689 = vsel %vm337, 0.0, %v668
      %v690 = vsel %vm337, 0.0, %v670
      %v691 = vsel %vm337, 0.0, %v672
      %v692 = vsel %vm337, 0.0, %v674
      %v693 = vsel %vm337, 0.0, %v676
      %v694 = vsel %vm337, 0.0, %v678
      %695 = vrot.lane.b32.xlu0 %v647, 127
      %v696 = vpop.permute.xlu0 %695
      %697 = vrot.lane.b32.xlu0 %v648, 127
      %v698 = vpop.permute.xlu0 %697
      %699 = vrot.lane.b32.xlu0 %v649, 127
      %v700 = vpop.permute.xlu0 %699
      %701 = vrot.lane.b32.xlu0 %v650, 127
      %v702 = vpop.permute.xlu0 %701
      %703 = vrot.lane.b32.xlu0 %v651, 127
      %v704 = vpop.permute.xlu0 %703
      %705 = vrot.lane.b32.xlu0 %v652, 127
      %v706 = vpop.permute.xlu0 %705
      %707 = vrot.lane.b32.xlu0 %v653, 127
      %v708 = vpop.permute.xlu0 %707
      %709 = vrot.lane.b32.xlu0 %v654, 127
      %v710 = vpop.permute.xlu0 %709
      %v719 = vsel %vm370, %v696, 0.0
      %v720 = vsel %vm370, %v698, 0.0
      %v721 = vsel %vm370, %v700, 0.0
      %v722 = vsel %vm370, %v702, 0.0
      %v723 = vsel %vm370, %v704, 0.0
      %v724 = vsel %vm370, %v706, 0.0
      %v725 = vsel %vm370, %v708, 0.0
      %v726 = vsel %vm370, %v710, 0.0
      %v728 = vsel %vm379, %v265, 0
      %v731 = vsel %vm379, %v266, 0
      %v734 = vsel %vm379, %v267, 0
      %v737 = vsel %vm379, %v268, 0
      %v740 = vsel %vm379, %v269, 0
      %v743 = vsel %vm379, %v270, 0
      %v746 = vsel %vm379, %v271, 0
      %v749 = vsel %vm379, %v272, 0
      %751 = vmatpush.msra.mxu0 0.0
      %752 = vmatpush.msra.mxu0 0.0
      %753 = vmatpush.msra.mxu0 0.0
      %754 = vmatpush.msra.mxu0 0.0
      %755 = vmatpush.msra.mxu0 0.0
      %756 = vmatpush.msra.mxu0 0.0
      %757 = vmatpush.msra.mxu0 0.0
      %758 = vmatpush.msra.mxu0 0.0
      %759 = vmatpush.msra.mxu0 %v654
      %760 = vmatpush.msra.mxu0 %v653
      %761 = vmatpush.msra.mxu0 %v652
      %762 = vmatpush.msra.mxu0 %v651
      %763 = vmatpush.msra.mxu0 %v650
      %764 = vmatpush.msra.mxu0 %v649
      %765 = vmatpush.msra.mxu0 %v648
      %766 = vmatpush.msra.mxu0 %v647
      %767 = vmatmul.f32.gmra.mxu0 %v728
      %v768 = vpop.f32.mrf.mxu0
      %v769 = vadd.f32 0.0, %v768
      %770 = vmatmul.f32.gmra.mxu0 %v731
      %v771 = vpop.f32.mrf.mxu0
      %v772 = vadd.f32 0.0, %v771
      %773 = vmatmul.f32.gmra.mxu0 %v734
      %v774 = vpop.f32.mrf.mxu0
      %v775 = vadd.f32 0.0, %v774
      %776 = vmatmul.f32.gmra.mxu0 %v737
      %v777 = vpop.f32.mrf.mxu0
      %v778 = vadd.f32 0.0, %v777
      %779 = vmatmul.f32.gmra.mxu0 %v740
      %v780 = vpop.f32.mrf.mxu0
      %v781 = vadd.f32 0.0, %v780
      %782 = vmatmul.f32.gmra.mxu0 %v743
      %v783 = vpop.f32.mrf.mxu0
      %v784 = vadd.f32 0.0, %v783
      %785 = vmatmul.f32.gmra.mxu0 %v746
      %v786 = vpop.f32.mrf.mxu0
      %v787 = vadd.f32 0.0, %v786
      %788 = vmatmul.f32.gmra.mxu0 %v749
      %v789 = vpop.f32.mrf.mxu0
      %v790 = vadd.f32 0.0, %v789
      %791 = vdwg.mxu0
      %v793 = vsel %vm379, %v257, 0
      %v796 = vsel %vm379, %v258, 0
      %v799 = vsel %vm379, %v259, 0
      %v802 = vsel %vm379, %v260, 0
      %v805 = vsel %vm379, %v261, 0
      %v808 = vsel %vm379, %v262, 0
      %v811 = vsel %vm379, %v263, 0
      %v814 = vsel %vm379, %v264, 0
      %816 = vmatpush.msra.mxu0 0.0
      %817 = vmatpush.msra.mxu0 0.0
      %818 = vmatpush.msra.mxu0 0.0
      %819 = vmatpush.msra.mxu0 0.0
      %820 = vmatpush.msra.mxu0 0.0
      %821 = vmatpush.msra.mxu0 0.0
      %822 = vmatpush.msra.mxu0 0.0
      %823 = vmatpush.msra.mxu0 0.0
      %824 = vmatpush.msra.mxu0 %v694
      %825 = vmatpush.msra.mxu0 %v693
      %826 = vmatpush.msra.mxu0 %v692
      %827 = vmatpush.msra.mxu0 %v691
      %828 = vmatpush.msra.mxu0 %v690
      %829 = vmatpush.msra.mxu0 %v689
      %830 = vmatpush.msra.mxu0 %v688
      %831 = vmatpush.msra.mxu0 %v687
      %832 = vmatmul.f32.gmra.mxu0 %v793
      %v833 = vpop.f32.mrf.mxu0
      %v834 = vadd.f32 %v769, %v833
      %835 = vmatmul.f32.gmra.mxu0 %v796
      %v836 = vpop.f32.mrf.mxu0
      %v837 = vadd.f32 %v772, %v836
      %838 = vmatmul.f32.gmra.mxu0 %v799
      %v839 = vpop.f32.mrf.mxu0
      %v840 = vadd.f32 %v775, %v839
      %841 = vmatmul.f32.gmra.mxu0 %v802
      %v842 = vpop.f32.mrf.mxu0
      %v843 = vadd.f32 %v778, %v842
      %844 = vmatmul.f32.gmra.mxu0 %v805
      %v845 = vpop.f32.mrf.mxu0
      %v846 = vadd.f32 %v781, %v845
      %847 = vmatmul.f32.gmra.mxu0 %v808
      %v848 = vpop.f32.mrf.mxu0
      %v849 = vadd.f32 %v784, %v848
      %850 = vmatmul.f32.gmra.mxu0 %v811
      %v851 = vpop.f32.mrf.mxu0
      %v852 = vadd.f32 %v787, %v851
      %853 = vmatmul.f32.gmra.mxu0 %v814
      %v854 = vpop.f32.mrf.mxu0
      %v855 = vadd.f32 %v790, %v854
      %856 = vdwg.mxu0
      %v858 = vsel %vm379, %v273, 0
      %v861 = vsel %vm379, %v274, 0
      %v864 = vsel %vm379, %v275, 0
      %v867 = vsel %vm379, %v276, 0
      %v870 = vsel %vm379, %v277, 0
      %v873 = vsel %vm379, %v278, 0
      %v876 = vsel %vm379, %v279, 0
      %v879 = vsel %vm379, %v280, 0
      %881 = vmatpush.msra.mxu0 0.0
      %882 = vmatpush.msra.mxu0 0.0
      %883 = vmatpush.msra.mxu0 0.0
      %884 = vmatpush.msra.mxu0 0.0
      %885 = vmatpush.msra.mxu0 0.0
      %886 = vmatpush.msra.mxu0 0.0
      %887 = vmatpush.msra.mxu0 0.0
      %888 = vmatpush.msra.mxu0 0.0
      %889 = vmatpush.msra.mxu0 %v726
      %890 = vmatpush.msra.mxu0 %v725
      %891 = vmatpush.msra.mxu0 %v724
      %892 = vmatpush.msra.mxu0 %v723
      %893 = vmatpush.msra.mxu0 %v722
      %894 = vmatpush.msra.mxu0 %v721
      %895 = vmatpush.msra.mxu0 %v720
      %896 = vmatpush.msra.mxu0 %v719
      %897 = vmatmul.f32.gmra.mxu0 %v858
      %v898 = vpop.f32.mrf.mxu0
      %v899 = vadd.f32 0.0, %v898
      %900 = vmatmul.f32.gmra.mxu0 %v861
      %v901 = vpop.f32.mrf.mxu0
      %v902 = vadd.f32 0.0, %v901
      %903 = vmatmul.f32.gmra.mxu0 %v864
      %v904 = vpop.f32.mrf.mxu0
      %v905 = vadd.f32 0.0, %v904
      %906 = vmatmul.f32.gmra.mxu0 %v867
      %v907 = vpop.f32.mrf.mxu0
      %v908 = vadd.f32 0.0, %v907
      %909 = vmatmul.f32.gmra.mxu0 %v870
      %v910 = vpop.f32.mrf.mxu0
      %v911 = vadd.f32 0.0, %v910
      %912 = vmatmul.f32.gmra.mxu0 %v873
      %v913 = vpop.f32.mrf.mxu0
      %v914 = vadd.f32 0.0, %v913
      %915 = vmatmul.f32.gmra.mxu0 %v876
      %v916 = vpop.f32.mrf.mxu0
      %v917 = vadd.f32 0.0, %v916
      %918 = vmatmul.f32.gmra.mxu0 %v879
      %v919 = vpop.f32.mrf.mxu0
      %v920 = vadd.f32 0.0, %v919
      %921 = vdwg.mxu0
      %v922 = vadd.f32 %v834, %v899
      %v923 = vadd.f32 %v837, %v902
      %v924 = vadd.f32 %v840, %v905
      %v925 = vadd.f32 %v843, %v908
      %v926 = vadd.f32 %v846, %v911
      %v927 = vadd.f32 %v849, %v914
      %v928 = vadd.f32 %v852, %v917
      %v929 = vadd.f32 %v855, %v920
      %931 = vset.pattern.permute.xlu0 0
      %932 = vperm.xlu0 %931, %v289
      %v933 = vpop.permute.xlu0 %932
      %936 = vset.pattern.permute.xlu0 0
      %937 = vperm.xlu0 %936, %v290
      %v938 = vpop.permute.xlu0 %937
      %941 = vset.pattern.permute.xlu0 0
      %942 = vperm.xlu0 %941, %v291
      %v943 = vpop.permute.xlu0 %942
      %946 = vset.pattern.permute.xlu0 0
      %947 = vperm.xlu0 %946, %v292
      %v948 = vpop.permute.xlu0 %947
      %951 = vset.pattern.permute.xlu0 0
      %952 = vperm.xlu0 %951, %v293
      %v953 = vpop.permute.xlu0 %952
      %956 = vset.pattern.permute.xlu0 0
      %957 = vperm.xlu0 %956, %v294
      %v958 = vpop.permute.xlu0 %957
      %961 = vset.pattern.permute.xlu0 0
      %962 = vperm.xlu0 %961, %v295
      %v963 = vpop.permute.xlu0 %962
      %966 = vset.pattern.permute.xlu0 0
      %967 = vperm.xlu0 %966, %v296
      %v968 = vpop.permute.xlu0 %967
      %v970 = vadd.f32 %v922, %v933
      %v971 = vadd.f32 %v923, %v938
      %v972 = vadd.f32 %v924, %v943
      %v973 = vadd.f32 %v925, %v948
      %v974 = vadd.f32 %v926, %v953
      %v975 = vadd.f32 %v927, %v958
      %v976 = vadd.f32 %v928, %v963
      %v977 = vadd.f32 %v929, %v968
      %v978 = vadd.f32 %v970, %v297
      %v979 = vadd.f32 %v971, %v298
      %v980 = vadd.f32 %v972, %v299
      %v981 = vadd.f32 %v973, %v300
      %v982 = vadd.f32 %v974, %v301
      %v983 = vadd.f32 %v975, %v302
      %v984 = vadd.f32 %v976, %v303
      %v985 = vadd.f32 %v977, %v304
      %vm986 = vcmp.ge.f32.partialorder %v978, 0.0
      %vm987 = vcmp.ge.f32.partialorder %v979, 0.0
      %vm988 = vcmp.ge.f32.partialorder %v980, 0.0
      %vm989 = vcmp.ge.f32.partialorder %v981, 0.0
      %vm990 = vcmp.ge.f32.partialorder %v982, 0.0
      %vm991 = vcmp.ge.f32.partialorder %v983, 0.0
      %vm992 = vcmp.ge.f32.partialorder %v984, 0.0
      %vm993 = vcmp.ge.f32.partialorder %v985, 0.0
      %v994 = vmul.f32 %v978, 0.1
      %v995 = vmul.f32 %v979, 0.1
      %v996 = vmul.f32 %v980, 0.1
      %v997 = vmul.f32 %v981, 0.1
      %v998 = vmul.f32 %v982, 0.1
      %v999 = vmul.f32 %v983, 0.1
      %v1000 = vmul.f32 %v984, 0.1
      %v1001 = vmul.f32 %v985, 0.1
      %v1002 = vsel %vm986, %v978, %v994
      %v1003 = vsel %vm987, %v979, %v995
      %v1004 = vsel %vm988, %v980, %v996
      %v1005 = vsel %vm989, %v981, %v997
      %v1006 = vsel %vm990, %v982, %v998
      %v1007 = vsel %vm991, %v983, %v999
      %v1008 = vsel %vm992, %v984, %v1000
      %v1009 = vsel %vm993, %v985, %v1001
      %vm1010 = vcmask 130048
      %1011 = vst.msk [vmem:[%s231] sm:$0xff] %vm1010, %v1002
      %1012 = vst.msk [vmem:[%s231 + $0x8] sm:$0xff] %vm1010, %v1003
      %1013 = vst.msk [vmem:[%s231 + $0x10] sm:$0xff] %vm1010, %v1004
      %1014 = vst.msk [vmem:[%s231 + $0x18] sm:$0xff] %vm1010, %v1005
      %1015 = vst.msk [vmem:[%s231 + $0x20] sm:$0xff] %vm1010, %v1006
      %1016 = vst.msk [vmem:[%s231 + $0x28] sm:$0xff] %vm1010, %v1007
      %1017 = vst.msk [vmem:[%s231 + $0x30] sm:$0xff] %vm1010, %v1008
      %1018 = vst.msk [vmem:[%s231 + $0x38] sm:$0xff] %vm1010, %v1009
      %s1019 = scalar_lea.vmem %s224, 64
      %v1020 = vld [vmem:[%s1019] sm:$0xff]
      %v1021 = vld [vmem:[%s1019 + $0x8] sm:$0xff]
      %v1022 = vld [vmem:[%s1019 + $0x10] sm:$0xff]
      %v1023 = vld [vmem:[%s1019 + $0x18] sm:$0xff]
      %v1024 = vld [vmem:[%s1019 + $0x20] sm:$0xff]
      %v1025 = vld [vmem:[%s1019 + $0x28] sm:$0xff]
      %v1026 = vld [vmem:[%s1019 + $0x30] sm:$0xff]
      %v1027 = vld [vmem:[%s1019 + $0x38] sm:$0xff]
      %1036 = vrot.lane.b32.xlu0 %v1020, 1
      %v1037 = vpop.permute.xlu0 %1036
      %1038 = vrot.lane.b32.xlu0 %v1021, 1
      %v1039 = vpop.permute.xlu0 %1038
      %1040 = vrot.lane.b32.xlu0 %v1022, 1
      %v1041 = vpop.permute.xlu0 %1040
      %1042 = vrot.lane.b32.xlu0 %v1023, 1
      %v1043 = vpop.permute.xlu0 %1042
      %1044 = vrot.lane.b32.xlu0 %v1024, 1
      %v1045 = vpop.permute.xlu0 %1044
      %1046 = vrot.lane.b32.xlu0 %v1025, 1
      %v1047 = vpop.permute.xlu0 %1046
      %1048 = vrot.lane.b32.xlu0 %v1026, 1
      %v1049 = vpop.permute.xlu0 %1048
      %1050 = vrot.lane.b32.xlu0 %v1027, 1
      %v1051 = vpop.permute.xlu0 %1050
      %v1060 = vsel %vm337, 0.0, %v1037
      %v1061 = vsel %vm337, 0.0, %v1039
      %v1062 = vsel %vm337, 0.0, %v1041
      %v1063 = vsel %vm337, 0.0, %v1043
      %v1064 = vsel %vm337, 0.0, %v1045
      %v1065 = vsel %vm337, 0.0, %v1047
      %v1066 = vsel %vm337, 0.0, %v1049
      %v1067 = vsel %vm337, 0.0, %v1051
      %1068 = vrot.lane.b32.xlu0 %v1020, 127
      %v1069 = vpop.permute.xlu0 %1068
      %1070 = vrot.lane.b32.xlu0 %v1021, 127
      %v1071 = vpop.permute.xlu0 %1070
      %1072 = vrot.lane.b32.xlu0 %v1022, 127
      %v1073 = vpop.permute.xlu0 %1072
      %1074 = vrot.lane.b32.xlu0 %v1023, 127
      %v1075 = vpop.permute.xlu0 %1074
      %1076 = vrot.lane.b32.xlu0 %v1024, 127
      %v1077 = vpop.permute.xlu0 %1076
      %1078 = vrot.lane.b32.xlu0 %v1025, 127
      %v1079 = vpop.permute.xlu0 %1078
      %1080 = vrot.lane.b32.xlu0 %v1026, 127
      %v1081 = vpop.permute.xlu0 %1080
      %1082 = vrot.lane.b32.xlu0 %v1027, 127
      %v1083 = vpop.permute.xlu0 %1082
      %v1092 = vsel %vm370, %v1069, 0.0
      %v1093 = vsel %vm370, %v1071, 0.0
      %v1094 = vsel %vm370, %v1073, 0.0
      %v1095 = vsel %vm370, %v1075, 0.0
      %v1096 = vsel %vm370, %v1077, 0.0
      %v1097 = vsel %vm370, %v1079, 0.0
      %v1098 = vsel %vm370, %v1081, 0.0
      %v1099 = vsel %vm370, %v1083, 0.0
      %1100 = vmatpush.msra.mxu0 0.0
      %1101 = vmatpush.msra.mxu0 0.0
      %1102 = vmatpush.msra.mxu0 0.0
      %1103 = vmatpush.msra.mxu0 0.0
      %1104 = vmatpush.msra.mxu0 0.0
      %1105 = vmatpush.msra.mxu0 0.0
      %1106 = vmatpush.msra.mxu0 0.0
      %1107 = vmatpush.msra.mxu0 0.0
      %1108 = vmatpush.msra.mxu0 %v1027
      %1109 = vmatpush.msra.mxu0 %v1026
      %1110 = vmatpush.msra.mxu0 %v1025
      %1111 = vmatpush.msra.mxu0 %v1024
      %1112 = vmatpush.msra.mxu0 %v1023
      %1113 = vmatpush.msra.mxu0 %v1022
      %1114 = vmatpush.msra.mxu0 %v1021
      %1115 = vmatpush.msra.mxu0 %v1020
      %1116 = vmatmul.f32.gmra.mxu0 %v381
      %v1117 = vpop.f32.mrf.mxu0
      %v1118 = vadd.f32 0.0, %v1117
      %1119 = vmatmul.f32.gmra.mxu0 %v384
      %v1120 = vpop.f32.mrf.mxu0
      %v1121 = vadd.f32 0.0, %v1120
      %1122 = vmatmul.f32.gmra.mxu0 %v387
      %v1123 = vpop.f32.mrf.mxu0
      %v1124 = vadd.f32 0.0, %v1123
      %1125 = vmatmul.f32.gmra.mxu0 %v390
      %v1126 = vpop.f32.mrf.mxu0
      %v1127 = vadd.f32 0.0, %v1126
      %1128 = vmatmul.f32.gmra.mxu0 %v393
      %v1129 = vpop.f32.mrf.mxu0
      %v1130 = vadd.f32 0.0, %v1129
      %1131 = vmatmul.f32.gmra.mxu0 %v396
      %v1132 = vpop.f32.mrf.mxu0
      %v1133 = vadd.f32 0.0, %v1132
      %1134 = vmatmul.f32.gmra.mxu0 %v399
      %v1135 = vpop.f32.mrf.mxu0
      %v1136 = vadd.f32 0.0, %v1135
      %1137 = vmatmul.f32.gmra.mxu0 %v402
      %v1138 = vpop.f32.mrf.mxu0
      %v1139 = vadd.f32 0.0, %v1138
      %1140 = vdwg.mxu0
      %1141 = vmatpush.msra.mxu0 0.0
      %1142 = vmatpush.msra.mxu0 0.0
      %1143 = vmatpush.msra.mxu0 0.0
      %1144 = vmatpush.msra.mxu0 0.0
      %1145 = vmatpush.msra.mxu0 0.0
      %1146 = vmatpush.msra.mxu0 0.0
      %1147 = vmatpush.msra.mxu0 0.0
      %1148 = vmatpush.msra.mxu0 0.0
      %1149 = vmatpush.msra.mxu0 %v1067
      %1150 = vmatpush.msra.mxu0 %v1066
      %1151 = vmatpush.msra.mxu0 %v1065
      %1152 = vmatpush.msra.mxu0 %v1064
      %1153 = vmatpush.msra.mxu0 %v1063
      %1154 = vmatpush.msra.mxu0 %v1062
      %1155 = vmatpush.msra.mxu0 %v1061
      %1156 = vmatpush.msra.mxu0 %v1060
      %1157 = vmatmul.f32.gmra.mxu0 %v446
      %v1158 = vpop.f32.mrf.mxu0
      %v1159 = vadd.f32 %v1118, %v1158
      %1160 = vmatmul.f32.gmra.mxu0 %v449
      %v1161 = vpop.f32.mrf.mxu0
      %v1162 = vadd.f32 %v1121, %v1161
      %1163 = vmatmul.f32.gmra.mxu0 %v452
      %v1164 = vpop.f32.mrf.mxu0
      %v1165 = vadd.f32 %v1124, %v1164
      %1166 = vmatmul.f32.gmra.mxu0 %v455
      %v1167 = vpop.f32.mrf.mxu0
      %v1168 = vadd.f32 %v1127, %v1167
      %1169 = vmatmul.f32.gmra.mxu0 %v458
      %v1170 = vpop.f32.mrf.mxu0
      %v1171 = vadd.f32 %v1130, %v1170
      %1172 = vmatmul.f32.gmra.mxu0 %v461
      %v1173 = vpop.f32.mrf.mxu0
      %v1174 = vadd.f32 %v1133, %v1173
      %1175 = vmatmul.f32.gmra.mxu0 %v464
      %v1176 = vpop.f32.mrf.mxu0
      %v1177 = vadd.f32 %v1136, %v1176
      %1178 = vmatmul.f32.gmra.mxu0 %v467
      %v1179 = vpop.f32.mrf.mxu0
      %v1180 = vadd.f32 %v1139, %v1179
      %1181 = vdwg.mxu0
      %1182 = vmatpush.msra.mxu0 0.0
      %1183 = vmatpush.msra.mxu0 0.0
      %1184 = vmatpush.msra.mxu0 0.0
      %1185 = vmatpush.msra.mxu0 0.0
      %1186 = vmatpush.msra.mxu0 0.0
      %1187 = vmatpush.msra.mxu0 0.0
      %1188 = vmatpush.msra.mxu0 0.0
      %1189 = vmatpush.msra.mxu0 0.0
      %1190 = vmatpush.msra.mxu0 %v1099
      %1191 = vmatpush.msra.mxu0 %v1098
      %1192 = vmatpush.msra.mxu0 %v1097
      %1193 = vmatpush.msra.mxu0 %v1096
      %1194 = vmatpush.msra.mxu0 %v1095
      %1195 = vmatpush.msra.mxu0 %v1094
      %1196 = vmatpush.msra.mxu0 %v1093
      %1197 = vmatpush.msra.mxu0 %v1092
      %1198 = vmatmul.f32.gmra.mxu0 %v511
      %v1199 = vpop.f32.mrf.mxu0
      %v1200 = vadd.f32 0.0, %v1199
      %1201 = vmatmul.f32.gmra.mxu0 %v514
      %v1202 = vpop.f32.mrf.mxu0
      %v1203 = vadd.f32 0.0, %v1202
      %1204 = vmatmul.f32.gmra.mxu0 %v517
      %v1205 = vpop.f32.mrf.mxu0
      %v1206 = vadd.f32 0.0, %v1205
      %1207 = vmatmul.f32.gmra.mxu0 %v520
      %v1208 = vpop.f32.mrf.mxu0
      %v1209 = vadd.f32 0.0, %v1208
      %1210 = vmatmul.f32.gmra.mxu0 %v523
      %v1211 = vpop.f32.mrf.mxu0
      %v1212 = vadd.f32 0.0, %v1211
      %1213 = vmatmul.f32.gmra.mxu0 %v526
      %v1214 = vpop.f32.mrf.mxu0
      %v1215 = vadd.f32 0.0, %v1214
      %1216 = vmatmul.f32.gmra.mxu0 %v529
      %v1217 = vpop.f32.mrf.mxu0
      %v1218 = vadd.f32 0.0, %v1217
      %1219 = vmatmul.f32.gmra.mxu0 %v532
      %v1220 = vpop.f32.mrf.mxu0
      %v1221 = vadd.f32 0.0, %v1220
      %1222 = vdwg.mxu0
      %v1223 = vadd.f32 %v1159, %v1200
      %v1224 = vadd.f32 %v1162, %v1203
      %v1225 = vadd.f32 %v1165, %v1206
      %v1226 = vadd.f32 %v1168, %v1209
      %v1227 = vadd.f32 %v1171, %v1212
      %v1228 = vadd.f32 %v1174, %v1215
      %v1229 = vadd.f32 %v1177, %v1218
      %v1230 = vadd.f32 %v1180, %v1221
      %v1231 = vadd.f32 %v1223, %v586
      %v1232 = vadd.f32 %v1224, %v591
      %v1233 = vadd.f32 %v1225, %v596
      %v1234 = vadd.f32 %v1226, %v601
      %v1235 = vadd.f32 %v1227, %v606
      %v1236 = vadd.f32 %v1228, %v611
      %v1237 = vadd.f32 %v1229, %v616
      %v1238 = vadd.f32 %v1230, %v621
      %vm1239 = vcmp.ge.f32.partialorder %v1231, 0.0
      %vm1240 = vcmp.ge.f32.partialorder %v1232, 0.0
      %vm1241 = vcmp.ge.f32.partialorder %v1233, 0.0
      %vm1242 = vcmp.ge.f32.partialorder %v1234, 0.0
      %vm1243 = vcmp.ge.f32.partialorder %v1235, 0.0
      %vm1244 = vcmp.ge.f32.partialorder %v1236, 0.0
      %vm1245 = vcmp.ge.f32.partialorder %v1237, 0.0
      %vm1246 = vcmp.ge.f32.partialorder %v1238, 0.0
      %v1247 = vmul.f32 %v1231, 0.1
      %v1248 = vmul.f32 %v1232, 0.1
      %v1249 = vmul.f32 %v1233, 0.1
      %v1250 = vmul.f32 %v1234, 0.1
      %v1251 = vmul.f32 %v1235, 0.1
      %v1252 = vmul.f32 %v1236, 0.1
      %v1253 = vmul.f32 %v1237, 0.1
      %v1254 = vmul.f32 %v1238, 0.1
      %v1255 = vsel %vm1239, %v1231, %v1247
      %v1256 = vsel %vm1240, %v1232, %v1248
      %v1257 = vsel %vm1241, %v1233, %v1249
      %v1258 = vsel %vm1242, %v1234, %v1250
      %v1259 = vsel %vm1243, %v1235, %v1251
      %v1260 = vsel %vm1244, %v1236, %v1252
      %v1261 = vsel %vm1245, %v1237, %v1253
      %v1262 = vsel %vm1246, %v1238, %v1254
      %1271 = vrot.lane.b32.xlu0 %v1255, 1
      %v1272 = vpop.permute.xlu0 %1271
      %1273 = vrot.lane.b32.xlu0 %v1256, 1
      %v1274 = vpop.permute.xlu0 %1273
      %1275 = vrot.lane.b32.xlu0 %v1257, 1
      %v1276 = vpop.permute.xlu0 %1275
      %1277 = vrot.lane.b32.xlu0 %v1258, 1
      %v1278 = vpop.permute.xlu0 %1277
      %1279 = vrot.lane.b32.xlu0 %v1259, 1
      %v1280 = vpop.permute.xlu0 %1279
      %1281 = vrot.lane.b32.xlu0 %v1260, 1
      %v1282 = vpop.permute.xlu0 %1281
      %1283 = vrot.lane.b32.xlu0 %v1261, 1
      %v1284 = vpop.permute.xlu0 %1283
      %1285 = vrot.lane.b32.xlu0 %v1262, 1
      %v1286 = vpop.permute.xlu0 %1285
      %v1295 = vsel %vm337, 0.0, %v1272
      %v1296 = vsel %vm337, 0.0, %v1274
      %v1297 = vsel %vm337, 0.0, %v1276
      %v1298 = vsel %vm337, 0.0, %v1278
      %v1299 = vsel %vm337, 0.0, %v1280
      %v1300 = vsel %vm337, 0.0, %v1282
      %v1301 = vsel %vm337, 0.0, %v1284
      %v1302 = vsel %vm337, 0.0, %v1286
      %1303 = vrot.lane.b32.xlu0 %v1255, 127
      %v1304 = vpop.permute.xlu0 %1303
      %1305 = vrot.lane.b32.xlu0 %v1256, 127
      %v1306 = vpop.permute.xlu0 %1305
      %1307 = vrot.lane.b32.xlu0 %v1257, 127
      %v1308 = vpop.permute.xlu0 %1307
      %1309 = vrot.lane.b32.xlu0 %v1258, 127
      %v1310 = vpop.permute.xlu0 %1309
      %1311 = vrot.lane.b32.xlu0 %v1259, 127
      %v1312 = vpop.permute.xlu0 %1311
      %1313 = vrot.lane.b32.xlu0 %v1260, 127
      %v1314 = vpop.permute.xlu0 %1313
      %1315 = vrot.lane.b32.xlu0 %v1261, 127
      %v1316 = vpop.permute.xlu0 %1315
      %1317 = vrot.lane.b32.xlu0 %v1262, 127
      %v1318 = vpop.permute.xlu0 %1317
      %v1327 = vsel %vm370, %v1304, 0.0
      %v1328 = vsel %vm370, %v1306, 0.0
      %v1329 = vsel %vm370, %v1308, 0.0
      %v1330 = vsel %vm370, %v1310, 0.0
      %v1331 = vsel %vm370, %v1312, 0.0
      %v1332 = vsel %vm370, %v1314, 0.0
      %v1333 = vsel %vm370, %v1316, 0.0
      %v1334 = vsel %vm370, %v1318, 0.0
      %1335 = vmatpush.msra.mxu0 0.0
      %1336 = vmatpush.msra.mxu0 0.0
      %1337 = vmatpush.msra.mxu0 0.0
      %1338 = vmatpush.msra.mxu0 0.0
      %1339 = vmatpush.msra.mxu0 0.0
      %1340 = vmatpush.msra.mxu0 0.0
      %1341 = vmatpush.msra.mxu0 0.0
      %1342 = vmatpush.msra.mxu0 0.0
      %1343 = vmatpush.msra.mxu0 %v1262
      %1344 = vmatpush.msra.mxu0 %v1261
      %1345 = vmatpush.msra.mxu0 %v1260
      %1346 = vmatpush.msra.mxu0 %v1259
      %1347 = vmatpush.msra.mxu0 %v1258
      %1348 = vmatpush.msra.mxu0 %v1257
      %1349 = vmatpush.msra.mxu0 %v1256
      %1350 = vmatpush.msra.mxu0 %v1255
      %1351 = vmatmul.f32.gmra.mxu0 %v728
      %v1352 = vpop.f32.mrf.mxu0
      %v1353 = vadd.f32 0.0, %v1352
      %1354 = vmatmul.f32.gmra.mxu0 %v731
      %v1355 = vpop.f32.mrf.mxu0
      %v1356 = vadd.f32 0.0, %v1355
      %1357 = vmatmul.f32.gmra.mxu0 %v734
      %v1358 = vpop.f32.mrf.mxu0
      %v1359 = vadd.f32 0.0, %v1358
      %1360 = vmatmul.f32.gmra.mxu0 %v737
      %v1361 = vpop.f32.mrf.mxu0
      %v1362 = vadd.f32 0.0, %v1361
      %1363 = vmatmul.f32.gmra.mxu0 %v740
      %v1364 = vpop.f32.mrf.mxu0
      %v1365 = vadd.f32 0.0, %v1364
      %1366 = vmatmul.f32.gmra.mxu0 %v743
      %v1367 = vpop.f32.mrf.mxu0
      %v1368 = vadd.f32 0.0, %v1367
      %1369 = vmatmul.f32.gmra.mxu0 %v746
      %v1370 = vpop.f32.mrf.mxu0
      %v1371 = vadd.f32 0.0, %v1370
      %1372 = vmatmul.f32.gmra.mxu0 %v749
      %v1373 = vpop.f32.mrf.mxu0
      %v1374 = vadd.f32 0.0, %v1373
      %1375 = vdwg.mxu0
      %1376 = vmatpush.msra.mxu0 0.0
      %1377 = vmatpush.msra.mxu0 0.0
      %1378 = vmatpush.msra.mxu0 0.0
      %1379 = vmatpush.msra.mxu0 0.0
      %1380 = vmatpush.msra.mxu0 0.0
      %1381 = vmatpush.msra.mxu0 0.0
      %1382 = vmatpush.msra.mxu0 0.0
      %1383 = vmatpush.msra.mxu0 0.0
      %1384 = vmatpush.msra.mxu0 %v1302
      %1385 = vmatpush.msra.mxu0 %v1301
      %1386 = vmatpush.msra.mxu0 %v1300
      %1387 = vmatpush.msra.mxu0 %v1299
      %1388 = vmatpush.msra.mxu0 %v1298
      %1389 = vmatpush.msra.mxu0 %v1297
      %1390 = vmatpush.msra.mxu0 %v1296
      %1391 = vmatpush.msra.mxu0 %v1295
      %1392 = vmatmul.f32.gmra.mxu0 %v793
      %v1393 = vpop.f32.mrf.mxu0
      %v1394 = vadd.f32 %v1353, %v1393
      %1395 = vmatmul.f32.gmra.mxu0 %v796
      %v1396 = vpop.f32.mrf.mxu0
      %v1397 = vadd.f32 %v1356, %v1396
      %1398 = vmatmul.f32.gmra.mxu0 %v799
      %v1399 = vpop.f32.mrf.mxu0
      %v1400 = vadd.f32 %v1359, %v1399
      %1401 = vmatmul.f32.gmra.mxu0 %v802
      %v1402 = vpop.f32.mrf.mxu0
      %v1403 = vadd.f32 %v1362, %v1402
      %1404 = vmatmul.f32.gmra.mxu0 %v805
      %v1405 = vpop.f32.mrf.mxu0
      %v1406 = vadd.f32 %v1365, %v1405
      %1407 = vmatmul.f32.gmra.mxu0 %v808
      %v1408 = vpop.f32.mrf.mxu0
      %v1409 = vadd.f32 %v1368, %v1408
      %1410 = vmatmul.f32.gmra.mxu0 %v811
      %v1411 = vpop.f32.mrf.mxu0
      %v1412 = vadd.f32 %v1371, %v1411
      %1413 = vmatmul.f32.gmra.mxu0 %v814
      %v1414 = vpop.f32.mrf.mxu0
      %v1415 = vadd.f32 %v1374, %v1414
      %1416 = vdwg.mxu0
      %1417 = vmatpush.msra.mxu0 0.0
      %1418 = vmatpush.msra.mxu0 0.0
      %1419 = vmatpush.msra.mxu0 0.0
      %1420 = vmatpush.msra.mxu0 0.0
      %1421 = vmatpush.msra.mxu0 0.0
      %1422 = vmatpush.msra.mxu0 0.0
      %1423 = vmatpush.msra.mxu0 0.0
      %1424 = vmatpush.msra.mxu0 0.0
      %1425 = vmatpush.msra.mxu0 %v1334
      %1426 = vmatpush.msra.mxu0 %v1333
      %1427 = vmatpush.msra.mxu0 %v1332
      %1428 = vmatpush.msra.mxu0 %v1331
      %1429 = vmatpush.msra.mxu0 %v1330
      %1430 = vmatpush.msra.mxu0 %v1329
      %1431 = vmatpush.msra.mxu0 %v1328
      %1432 = vmatpush.msra.mxu0 %v1327
      %1433 = vmatmul.f32.gmra.mxu0 %v858
      %v1434 = vpop.f32.mrf.mxu0
      %v1435 = vadd.f32 0.0, %v1434
      %1436 = vmatmul.f32.gmra.mxu0 %v861
      %v1437 = vpop.f32.mrf.mxu0
      %v1438 = vadd.f32 0.0, %v1437
      %1439 = vmatmul.f32.gmra.mxu0 %v864
      %v1440 = vpop.f32.mrf.mxu0
      %v1441 = vadd.f32 0.0, %v1440
      %1442 = vmatmul.f32.gmra.mxu0 %v867
      %v1443 = vpop.f32.mrf.mxu0
      %v1444 = vadd.f32 0.0, %v1443
      %1445 = vmatmul.f32.gmra.mxu0 %v870
      %v1446 = vpop.f32.mrf.mxu0
      %v1447 = vadd.f32 0.0, %v1446
      %1448 = vmatmul.f32.gmra.mxu0 %v873
      %v1449 = vpop.f32.mrf.mxu0
      %v1450 = vadd.f32 0.0, %v1449
      %1451 = vmatmul.f32.gmra.mxu0 %v876
      %v1452 = vpop.f32.mrf.mxu0
      %v1453 = vadd.f32 0.0, %v1452
      %1454 = vmatmul.f32.gmra.mxu0 %v879
      %v1455 = vpop.f32.mrf.mxu0
      %v1456 = vadd.f32 0.0, %v1455
      %1457 = vdwg.mxu0
      %v1458 = vadd.f32 %v1394, %v1435
      %v1459 = vadd.f32 %v1397, %v1438
      %v1460 = vadd.f32 %v1400, %v1441
      %v1461 = vadd.f32 %v1403, %v1444
      %v1462 = vadd.f32 %v1406, %v1447
      %v1463 = vadd.f32 %v1409, %v1450
      %v1464 = vadd.f32 %v1412, %v1453
      %v1465 = vadd.f32 %v1415, %v1456
      %v1466 = vadd.f32 %v1458, %v933
      %v1467 = vadd.f32 %v1459, %v938
      %v1468 = vadd.f32 %v1460, %v943
      %v1469 = vadd.f32 %v1461, %v948
      %v1470 = vadd.f32 %v1462, %v953
      %v1471 = vadd.f32 %v1463, %v958
      %v1472 = vadd.f32 %v1464, %v963
      %v1473 = vadd.f32 %v1465, %v968
      %v1474 = vadd.f32 %v1466, %v1020
      %v1475 = vadd.f32 %v1467, %v1021
      %v1476 = vadd.f32 %v1468, %v1022
      %v1477 = vadd.f32 %v1469, %v1023
      %v1478 = vadd.f32 %v1470, %v1024
      %v1479 = vadd.f32 %v1471, %v1025
      %v1480 = vadd.f32 %v1472, %v1026
      %v1481 = vadd.f32 %v1473, %v1027
      %vm1482 = vcmp.ge.f32.partialorder %v1474, 0.0
      %vm1483 = vcmp.ge.f32.partialorder %v1475, 0.0
      %vm1484 = vcmp.ge.f32.partialorder %v1476, 0.0
      %vm1485 = vcmp.ge.f32.partialorder %v1477, 0.0
      %vm1486 = vcmp.ge.f32.partialorder %v1478, 0.0
      %vm1487 = vcmp.ge.f32.partialorder %v1479, 0.0
      %vm1488 = vcmp.ge.f32.partialorder %v1480, 0.0
      %vm1489 = vcmp.ge.f32.partialorder %v1481, 0.0
      %v1490 = vmul.f32 %v1474, 0.1
      %v1491 = vmul.f32 %v1475, 0.1
      %v1492 = vmul.f32 %v1476, 0.1
      %v1493 = vmul.f32 %v1477, 0.1
      %v1494 = vmul.f32 %v1478, 0.1
      %v1495 = vmul.f32 %v1479, 0.1
      %v1496 = vmul.f32 %v1480, 0.1
      %v1497 = vmul.f32 %v1481, 0.1
      %v1498 = vsel %vm1482, %v1474, %v1490
      %v1499 = vsel %vm1483, %v1475, %v1491
      %v1500 = vsel %vm1484, %v1476, %v1492
      %v1501 = vsel %vm1485, %v1477, %v1493
      %v1502 = vsel %vm1486, %v1478, %v1494
      %v1503 = vsel %vm1487, %v1479, %v1495
      %v1504 = vsel %vm1488, %v1480, %v1496
      %v1505 = vsel %vm1489, %v1481, %v1497
      %s1506 = scalar_lea.vmem %s231, 64
      %1507 = vst.msk [vmem:[%s1506] sm:$0xff] %vm1010, %v1498
      %1508 = vst.msk [vmem:[%s1506 + $0x8] sm:$0xff] %vm1010, %v1499
      %1509 = vst.msk [vmem:[%s1506 + $0x10] sm:$0xff] %vm1010, %v1500
      %1510 = vst.msk [vmem:[%s1506 + $0x18] sm:$0xff] %vm1010, %v1501
      %1511 = vst.msk [vmem:[%s1506 + $0x20] sm:$0xff] %vm1010, %v1502
      %1512 = vst.msk [vmem:[%s1506 + $0x28] sm:$0xff] %vm1010, %v1503
      %1513 = vst.msk [vmem:[%s1506 + $0x30] sm:$0xff] %vm1010, %v1504
      %1514 = vst.msk [vmem:[%s1506 + $0x38] sm:$0xff] %vm1010, %v1505
      %s1515 = smul.u32 2, %s16
      %p1516 = scmp.lt.s32.totalorder %s1515, 3
      %s1517 = scalar_select %p1516, %s1515, 3
      %s1518 = smul.addr %s1517, 8
      %s1519 = smul.addr %s1518, 8
      %s1520 = scalar_lea.vmem %s5, %s1519
      // Predicated region
      $region41: #{tpu_custom_call.1} parent=39 // pred_check
        %p1521 = pneg %p144
      $region42: #{tpu_custom_call.1} parent=39 // pred_check_branch
        %1523 = sbr.rel (%p1521) target = $region44
      $region43: #{tpu_custom_call.1} parent=39 // pred_region
        %s1524 = smul.u32 2, %s16
      $region44: #{tpu_custom_call.1} parent=39 // pred_fallthru
        _
    $region40: #{tpu_custom_call.1} parent=5 // pred_fallthru
      _
    %p1525 = scmp.le.s32.totalorder 2, %s11
    // Predicated region
    $region45: #{tpu_custom_call.1} parent=5 // pred_check
      %p1526 = pneg %p1525
    $region46: #{tpu_custom_call.1} parent=5 // pred_check_branch
      %1528 = sbr.rel (%p1526) target = $region48
    $region47: #{tpu_custom_call.1} parent=5 // pred_region
      %s1529 = ssub.s32 %s11, 2
      // Predicated region
      $region49: #{tpu_custom_call.1} parent=47 // pred_check
        %p1530 = pneg %p150
      $region50: #{tpu_custom_call.1} parent=47 // pred_check_branch
        %1532 = sbr.rel (%p1530) target = $region52
      $region51: #{tpu_custom_call.1} parent=47 // pred_region
        %s1533 = smul.u32 2, %s17
        %p1534 = scmp.lt.s32.totalorder %s1533, 3
        %s1535 = scalar_select %p1534, %s1533, 3
        %s1536 = smul.addr %s1535, 8
        %s1537 = smul.addr %s1536, 8
        %s1538 = scalar_lea.vmem %s5, %s1537
      $region52: #{tpu_custom_call.1} parent=47 // pred_fallthru
        _
    $region48: #{tpu_custom_call.1} parent=5 // pred_fallthru
      _
  $region6: #{tpu_custom_call.1} parent=0 // loop_footer
    %s15 = sadd.s32 1, %s11
  $region7: #{tpu_custom_call.1} parent=0 // loop_footer_branch
    %10 = sbr.rel target = $region3
  $region8: #{tpu_custom_call.1} parent=0 // loop_exit
    _

</llo_original>
